<compile_context>
chip_gen: v7x
topology: tpu7x:2x2x1
jax: 0.10.0
libtpu: 0.0.40
codegen_flags: <defaults>
</compile_context>

<pallas_src>
import jax
import jax.numpy as jnp
from jax import lax
from jax.experimental import pallas as pl
from jax.experimental.pallas import tpu as pltpu


def _round_up(x, m):
    return ((x + m - 1) // m) * m


# ----------------------------- Pallas kernel ------------------------------- #

def rnn_fused_kernel(tok_ref, m_ref, emb_ref, embproj_ref, whh_ref, brnn_ref,
                     wfc_ref, bfc_ref, invc_ref, out_ref,
                     h_scr, acc_scr, pre_scr):
    """Fused embed + mask + Elman RNN + residual + mean pool + final linear.

    Grid: (batch tiles ["parallel"], time chunks ["arbitrary"]).  Per step:
      tok_ref:     (Tc, Bt, 1)   i32   token ids (time-major)
      m_ref:       (Tc, Bt, 1)   f32   attention mask
      emb_ref:     (V, D)        f32   embedding table (zero padded)
      embproj_ref: (V, H)        bf16  emb @ W_ih (pre-projected embeddings)
      whh_ref:     (H, H)        bf16  hidden->hidden weight (pre-transposed)
      brnn_ref:    (1, H)        f32   combined RNN bias (b_ih + b_hh)
      wfc_ref:     (H, O)        bf16  final linear weight (pre-transposed)
      bfc_ref:     (1, O)        f32   final linear bias
      invc_ref:    (Bt, 1)       f32   1 / clamp(sum(mask), 1e-9)
      out_ref:     (Bt, O)       f32   logits (written on last time chunk)
    Scratch (persists across the time axis):
      h_scr   (Bt, H)     f32   running hidden state (loaded/stored 1x/chunk)
      acc_scr (Bt, H)     f32   sum_t m_t*(h_t + x_t)
      pre_scr (Tc, Bt, H) f32   per-chunk masked input projection + bias
    """
    t_idx = pl.program_id(1)

    @pl.when(t_idx == 0)
    def _init():
        h_scr[...] = jnp.zeros_like(h_scr)
        acc_scr[...] = jnp.zeros_like(acc_scr)

    tc, bt, _ = tok_ref.shape
    v = emb_ref.shape[0]
    h_dim = whh_ref.shape[0]
    rows = tc * bt

    # ---- fused embedding gather + mask + input projection (off the serial
    # path): one-hot(tok) scaled by the mask, one MXU matmul per chunk. ------
    tok2 = tok_ref[...].reshape(rows, 1)
    m2 = m_ref[...].reshape(rows, 1)
    eq = tok2 == lax.broadcasted_iota(jnp.int32, (rows, v), 1)
    onehot = eq.astype(jnp.float32) * m2                       # (rows, V)
    pre = jnp.dot(onehot.astype(embproj_ref.dtype), embproj_ref[...],
                  preferred_element_type=jnp.float32) + brnn_ref[...]
    pre_scr[...] = pre.reshape(tc, bt, h_dim)

    # pooled x-contribution for the whole chunk: sum_t m_t * x_t
    oh_sum = jnp.sum(onehot.reshape(tc, bt, v), axis=0)        # (bt, V)
    xm = jnp.dot(oh_sum, emb_ref[...],
                 preferred_element_type=jnp.float32)           # (bt, D)

    whh = whh_ref[...]

    def step(t, carry):
        h, hacc = carry
        m_t = m_ref[t]                                         # (bt, 1)
        h_new = jnp.tanh(
            pre_scr[t]
            + jnp.dot(h.astype(whh.dtype), whh,
                      preferred_element_type=jnp.float32))
        h = h + m_t * (h_new - h)                              # hold if mask==0
        hacc = hacc + m_t * h
        return (h, hacc)

    h0 = h_scr[...]
    acc0 = jnp.zeros((bt, h_dim), jnp.float32)
    h_fin, hacc = lax.fori_loop(0, tc, step, (h0, acc0),
                                unroll=True if tc <= 16 else 8)

    h_scr[...] = h_fin
    acc_scr[...] = acc_scr[...] + hacc + xm

    @pl.when(t_idx == pl.num_programs(1) - 1)
    def _finalize():
        pooled = acc_scr[...] * invc_ref[...]
        out_ref[...] = (jnp.dot(pooled.astype(wfc_ref.dtype), wfc_ref[...],
                                preferred_element_type=jnp.float32)
                        + bfc_ref[...])


# ------------------------------ JAX wrapper -------------------------------- #

def init_params(key, num_tokens, input_size, hidden_size, output_size):
    assert input_size == hidden_size, "residual (rnn_out + x) needs D == H"
    ks = jax.random.split(key, 6)
    s = 1.0 / jnp.sqrt(hidden_size)
    return {
        "token_emb": jax.random.normal(ks[0], (num_tokens, input_size),
                                       jnp.float32),
        # weights stored PRE-TRANSPOSED so kernels do jnp.dot(a, w) with no .T
        "w_ih": jax.random.uniform(ks[1], (input_size, hidden_size),
                                   jnp.float32, -s, s),
        "w_hh": jax.random.uniform(ks[2], (hidden_size, hidden_size),
                                   jnp.float32, -s, s),
        # combined bias b_ih + b_hh (single draw; init-only difference vs torch)
        "b_rnn": jax.random.uniform(ks[3], (1, hidden_size),
                                    jnp.float32, -s, s),
        "w_fc": jax.random.uniform(ks[4], (hidden_size, output_size),
                                   jnp.float32, -s, s),
        "b_fc": jax.random.uniform(ks[5], (1, output_size),
                                   jnp.float32, -s, s),
    }


def _vmem_capacity_bytes():
    try:
        return int(pltpu.get_tpu_info().vmem_capacity_bytes)
    except Exception:
        return 64 * 1024 * 1024          # conservative (v7x per-TC) fallback


@jax.jit
def custom_rnn_forward(tokens, attention_mask, params):
    """tokens: (B, T) int32, attention_mask: (B, T) -> logits (B, O)."""
    emb = params["token_emb"]                      # (V, D) f32
    V, D = emb.shape
    H = params["w_hh"].shape[0]
    O = params["w_fc"].shape[1]
    B, T = tokens.shape

    LANE, SUB = 128, 8
    # v6e/v7x: 256-wide MXU -> pad H (==D) to 256 when H is large enough.
    h_align = 256 if H >= 256 else LANE
    h_pad = _round_up(H, h_align)
    d_pad = h_pad                                  # D == H (residual)
    o_pad = _round_up(O, LANE)
    v_pad = _round_up(V, LANE)

    # ---- batch tile: multiple of 8, and >=2 tiles on the "parallel" axis
    # whenever the padded batch allows it (lights up v7x's second TC). -------
    b_pad = _round_up(B, SUB)
    bt_cap = 256 if h_pad >= 256 else 128
    if b_pad >= 2 * SUB:
        bt = max(SUB, min(bt_cap, (b_pad // 2) // SUB * SUB))
    else:
        bt = b_pad
    b_pad = _round_up(b_pad, bt)

    # ---- generation-aware time chunk / VMEM budgeting ----------------------
    vmem_cap = _vmem_capacity_bytes()              # 128 MiB v5e/v6e, 64 MiB v7x
    vmem_limit = int(max(32 * 1024 * 1024,
                         min(vmem_cap // 2, 96 * 1024 * 1024)))
    # resident (double-buffered) weight blocks
    const_bytes = 2 * (v_pad * d_pad * 4 + v_pad * h_pad * 2
                       + h_pad * h_pad * 2 + h_pad * o_pad * 2)
    # per time-step VMEM cost: pre_scr + projection transient + one-hot
    # (f32 + bf16 copy) + token/mask blocks (double-buffered)
    per_row = bt * (h_pad * 4 * 2 + v_pad * 6 + 16)
    budget = max(vmem_limit - const_bytes - (4 << 20), 1 << 20)
    tc = max(SUB, min(_round_up(T, SUB), (budget // per_row) // SUB * SUB, 512))
    t_pad = _round_up(T, tc)

    mask = attention_mask.astype(jnp.float32)      # (B, T)

    # Only tiny (B, T) scalar streams go through HBM: token ids + mask,
    # time-major.  The (B, T, D) activation tensor is never materialized.
    tok_p = jnp.zeros((b_pad, t_pad), jnp.int32).at[:B, :T].set(
        tokens.astype(jnp.int32))
    m_p = jnp.zeros((b_pad, t_pad), jnp.float32).at[:B, :T].set(mask)
    tok_tm = jnp.transpose(tok_p, (1, 0))[..., None]   # (T_pad, B_pad, 1) i32
    m_tm = jnp.transpose(m_p, (1, 0))[..., None]       # (T_pad, B_pad, 1) f32

    # 1 / clamp(sum(mask), 1e-9) computed once in the wrapper.
    cnt = jnp.maximum(jnp.sum(mask, axis=1, keepdims=True), 1e-9)   # (B, 1)
    invc_p = jnp.zeros((b_pad, 1), jnp.float32).at[:B].set(1.0 / cnt)

    bf16 = jnp.bfloat16
    emb_p = jnp.zeros((v_pad, d_pad), jnp.float32).at[:V, :D].set(emb)
    embproj = (emb @ params["w_ih"]).astype(bf16)                    # (V, H)
    embproj_p = jnp.zeros((v_pad, h_pad), bf16).at[:V, :H].set(embproj)
    whh_p = jnp.zeros((h_pad, h_pad), bf16).at[:H, :H].set(
        params["w_hh"].astype(bf16))
    wfc_p = jnp.zeros((h_pad, o_pad), bf16).at[:H, :O].set(
        params["w_fc"].astype(bf16))
    brnn_p = jnp.zeros((1, h_pad), jnp.float32).at[:, :H].set(params["b_rnn"])
    bfc_p = jnp.zeros((1, o_pad), jnp.float32).at[:, :O].set(params["b_fc"])

    grid = (b_pad // bt, t_pad // tc)

    logits_padded = pl.pallas_call(
        rnn_fused_kernel,
        out_shape=jax.ShapeDtypeStruct((b_pad, o_pad), jnp.float32),
        grid_spec=pltpu.PrefetchScalarGridSpec(
            num_scalar_prefetch=0,
            grid=grid,
            in_specs=[
                pl.BlockSpec((tc, bt, 1),     lambda b, t: (t, b, 0)),  # tokens
                pl.BlockSpec((tc, bt, 1),     lambda b, t: (t, b, 0)),  # mask
                pl.BlockSpec((v_pad, d_pad),  lambda b, t: (0, 0)),     # emb
                pl.BlockSpec((v_pad, h_pad),  lambda b, t: (0, 0)),     # emb@W_ih
                pl.BlockSpec((h_pad, h_pad),  lambda b, t: (0, 0)),     # W_hh
                pl.BlockSpec((1, h_pad),      lambda b, t: (0, 0)),     # b_rnn
                pl.BlockSpec((h_pad, o_pad),  lambda b, t: (0, 0)),     # W_fc
                pl.BlockSpec((1, o_pad),      lambda b, t: (0, 0)),     # b_fc
                pl.BlockSpec((bt, 1),         lambda b, t: (b, 0)),     # 1/count
            ],
            out_specs=pl.BlockSpec((bt, o_pad), lambda b, t: (b, 0)),
            scratch_shapes=[
                pltpu.VMEM((bt, h_pad), jnp.float32),       # h
                pltpu.VMEM((bt, h_pad), jnp.float32),       # pooling accumulator
                pltpu.VMEM((tc, bt, h_pad), jnp.float32),   # chunk input proj
            ],
        ),
        compiler_params=pltpu.CompilerParams(
            dimension_semantics=("parallel", "arbitrary"),  # batch || on v7x TCs
            vmem_limit_bytes=vmem_limit,
        ),
    )(tok_tm, m_tm, emb_p, embproj_p, whh_p, brnn_p, wfc_p, bfc_p, invc_p)

    return logits_padded[:B, :O]


# --------------------------------- main ------------------------------------ #

if __name__ == "__main__":
    B, T = 2, 8
    NUM_TOKENS = 512
    D = H = 32          # input_size == hidden_size (needed for the residual)
    O = 8               # output_size

    key = jax.random.PRNGKey(0)
    k_tok, k_par = jax.random.split(key)

    tokens = jax.random.randint(k_tok, (B, T), 0, NUM_TOKENS, dtype=jnp.int32)
    lengths = jnp.array([T, 5], dtype=jnp.int32)
    attention_mask = (jnp.arange(T)[None, :] < lengths[:, None]).astype(
        jnp.float32)

    params = init_params(k_par, NUM_TOKENS, D, H, O)

    logits = custom_rnn_forward(tokens, attention_mask, params)
    logits = jax.block_until_ready(logits)

    assert logits.shape == (B, O)
    assert bool(jnp.all(jnp.isfinite(logits)))
    print("KERNEL_OK")
</pallas_src>

<mosaic_0001>
module attributes {stable_mosaic.version = 11 : i64} {
  func.func @rnn_fused_kernel(%arg0: i32, %arg1: i32, %arg2: memref<8x8x1xi32, #tpu.memory_space<vmem>>, %arg3: memref<8x8x1xf32, #tpu.memory_space<vmem>>, %arg4: memref<512x128xf32, #tpu.memory_space<vmem>>, %arg5: memref<512x128xbf16, #tpu.memory_space<vmem>>, %arg6: memref<128x128xbf16, #tpu.memory_space<vmem>>, %arg7: memref<1x128xf32, #tpu.memory_space<vmem>>, %arg8: memref<128x128xbf16, #tpu.memory_space<vmem>>, %arg9: memref<1x128xf32, #tpu.memory_space<vmem>>, %arg10: memref<8x1xf32, #tpu.memory_space<vmem>>, %arg11: memref<8x128xf32, #tpu.memory_space<vmem>>, %arg12: memref<8x128xf32, #tpu.memory_space<vmem>>, %arg13: memref<8x128xf32, #tpu.memory_space<vmem>>, %arg14: memref<8x8x128xf32, #tpu.memory_space<vmem>>) attributes {dimension_semantics = [#tpu.dimension_semantics<parallel>, #tpu.dimension_semantics<arbitrary>], iteration_bounds = array<i64: 1, 1>, scalar_prefetch = 0 : i64, scratch_operands = 3 : i64, tpu.core_type = #tpu.core_type<tc>, window_params = [{transform_indices = @transform_0, window_bounds = array<i64: 8, 8, 1>}, {transform_indices = @transform_1, window_bounds = array<i64: 8, 8, 1>}, {pipeline_mode = #tpu.pipeline_mode<synchronous>, transform_indices = @transform_2, window_bounds = array<i64: 512, 128>}, {pipeline_mode = #tpu.pipeline_mode<synchronous>, transform_indices = @transform_3, window_bounds = array<i64: 512, 128>}, {pipeline_mode = #tpu.pipeline_mode<synchronous>, transform_indices = @transform_4, window_bounds = array<i64: 128, 128>}, {pipeline_mode = #tpu.pipeline_mode<synchronous>, transform_indices = @transform_5, window_bounds = array<i64: 1, 128>}, {pipeline_mode = #tpu.pipeline_mode<synchronous>, transform_indices = @transform_6, window_bounds = array<i64: 128, 128>}, {pipeline_mode = #tpu.pipeline_mode<synchronous>, transform_indices = @transform_7, window_bounds = array<i64: 1, 128>}, {transform_indices = @transform_8, window_bounds = array<i64: 8, 1>}, {transform_indices = @transform_9, window_bounds = array<i64: 8, 128>}]} {
    %c0_i32 = arith.constant 0 : i32
    %0 = arith.cmpi eq, %arg1, %c0_i32 : i32
    %1 = arith.extui %0 : i1 to i32
    %c0_i32_0 = arith.constant 0 : i32
    %2 = arith.cmpi ne, %1, %c0_i32_0 : i32
    scf.if %2 {
      %cst_71 = arith.constant 0.000000e+00 : f32
      %173 = vector.broadcast %cst_71 : f32 to vector<8x128xf32>
      %c0_72 = arith.constant 0 : index
      %c0_73 = arith.constant 0 : index
      %174 = vector.load %arg12[%c0_72, %c0_73] : memref<8x128xf32, #tpu.memory_space<vmem>>, vector<8x128xf32>
      tpu.vector_store %arg12[%c0_72, %c0_73], %173 {strides = array<i32>} : memref<8x128xf32, #tpu.memory_space<vmem>>, vector<8x128xf32>,
      %cst_74 = arith.constant 0.000000e+00 : f32
      %175 = vector.broadcast %cst_74 : f32 to vector<8x128xf32>
      %c0_75 = arith.constant 0 : index
      %c0_76 = arith.constant 0 : index
      %176 = vector.load %arg13[%c0_75, %c0_76] : memref<8x128xf32, #tpu.memory_space<vmem>>, vector<8x128xf32>
      tpu.vector_store %arg13[%c0_75, %c0_76], %175 {strides = array<i32>} : memref<8x128xf32, #tpu.memory_space<vmem>>, vector<8x128xf32>,
    } else {
    }
    %c0 = arith.constant 0 : index
    %c0_1 = arith.constant 0 : index
    %c0_2 = arith.constant 0 : index
    %3 = vector.load %arg2[%c0, %c0_1, %c0_2] : memref<8x8x1xi32, #tpu.memory_space<vmem>>, vector<8x8x1xi32>
    %4 = vector.shape_cast %3 : vector<8x8x1xi32> to vector<64x1xi32>
    %c0_3 = arith.constant 0 : index
    %c0_4 = arith.constant 0 : index
    %c0_5 = arith.constant 0 : index
    %5 = vector.load %arg3[%c0_3, %c0_4, %c0_5] : memref<8x8x1xf32, #tpu.memory_space<vmem>>, vector<8x8x1xf32>
    %6 = vector.shape_cast %5 : vector<8x8x1xf32> to vector<64x1xf32>
    %7 = tpu.iota {dimensions = array<i32: 1>} : vector<64x512xi32>
    %8 = vector.broadcast %4 : vector<64x1xi32> to vector<64x512xi32>
    %9 = arith.cmpi eq, %8, %7 : vector<64x512xi32>
    %10 = arith.extui %9 : vector<64x512xi1> to vector<64x512xi32>
    %11 = arith.sitofp %10 : vector<64x512xi32> to vector<64x512xf32>
    %12 = vector.broadcast %6 : vector<64x1xf32> to vector<64x512xf32>
    %13 = arith.mulf %11, %12 : vector<64x512xf32>
    %14 = arith.truncf %13 : vector<64x512xf32> to vector<64x512xbf16>
    %c0_6 = arith.constant 0 : index
    %c0_7 = arith.constant 0 : index
    %15 = vector.load %arg5[%c0_6, %c0_7] : memref<512x128xbf16, #tpu.memory_space<vmem>>, vector<512x128xbf16>
    %cst = arith.constant dense<0.000000e+00> : vector<64x128xf32>
    %16 = tpu.matmul %14, %15, %cst {dimension_numbers = #tpu.dot_dimension_numbers<[1], [0], [0], [1], [0, 0, 1, 1], [], []>} : vector<64x512xbf16>, vector<512x128xbf16>, vector<64x128xf32> -> vector<64x128xf32>
    %c0_8 = arith.constant 0 : index
    %c0_9 = arith.constant 0 : index
    %17 = vector.load %arg7[%c0_8, %c0_9] : memref<1x128xf32, #tpu.memory_space<vmem>>, vector<1x128xf32>
    %18 = vector.broadcast %17 : vector<1x128xf32> to vector<64x128xf32>
    %19 = arith.addf %16, %18 : vector<64x128xf32>
    %20 = vector.shape_cast %19 : vector<64x128xf32> to vector<8x8x128xf32>
    %c0_10 = arith.constant 0 : index
    %c0_11 = arith.constant 0 : index
    %c0_12 = arith.constant 0 : index
    %21 = vector.load %arg14[%c0_10, %c0_11, %c0_12] : memref<8x8x128xf32, #tpu.memory_space<vmem>>, vector<8x8x128xf32>
    tpu.vector_store %arg14[%c0_10, %c0_11, %c0_12], %20 {strides = array<i32>} : memref<8x8x128xf32, #tpu.memory_space<vmem>>, vector<8x8x128xf32>,
    %22 = vector.shape_cast %13 : vector<64x512xf32> to vector<8x8x512xf32>
    %cst_13 = arith.constant dense<0.000000e+00> : vector<8x512xf32>
    %23 = vector.multi_reduction <add>, %22, %cst_13 [0] : vector<8x8x512xf32> to vector<8x512xf32>
    %c0_14 = arith.constant 0 : index
    %c0_15 = arith.constant 0 : index
    %24 = vector.load %arg4[%c0_14, %c0_15] : memref<512x128xf32, #tpu.memory_space<vmem>>, vector<512x128xf32>
    %cst_16 = arith.constant dense<0.000000e+00> : vector<8x128xf32>
    %25 = tpu.matmul %23, %24, %cst_16 {dimension_numbers = #tpu.dot_dimension_numbers<[1], [0], [0], [1], [0, 0, 1, 1], [], []>} : vector<8x512xf32>, vector<512x128xf32>, vector<8x128xf32> -> vector<8x128xf32>
    %c0_17 = arith.constant 0 : index
    %c0_18 = arith.constant 0 : index
    %26 = vector.load %arg6[%c0_17, %c0_18] : memref<128x128xbf16, #tpu.memory_space<vmem>>, vector<128x128xbf16>
    %c0_19 = arith.constant 0 : index
    %c0_20 = arith.constant 0 : index
    %27 = vector.load %arg12[%c0_19, %c0_20] : memref<8x128xf32, #tpu.memory_space<vmem>>, vector<8x128xf32>
    %cst_21 = arith.constant 0.000000e+00 : f32
    %28 = vector.broadcast %cst_21 : f32 to vector<8x128xf32>
    %c0_i32_22 = arith.constant 0 : i32
    %29 = arith.index_cast %c0_i32_22 : i32 to index
    %c0_23 = arith.constant 0 : index
    %c0_24 = arith.constant 0 : index
    %30 = vector.load %arg3[%29, %c0_23, %c0_24] : memref<8x8x1xf32, #tpu.memory_space<vmem>>, vector<1x8x1xf32>
    %31 = vector.shape_cast %30 : vector<1x8x1xf32> to vector<8x1xf32>
    %32 = arith.index_cast %c0_i32_22 : i32 to index
    %c0_25 = arith.constant 0 : index
    %c0_26 = arith.constant 0 : index
    %33 = vector.load %arg14[%32, %c0_25, %c0_26] : memref<8x8x128xf32, #tpu.memory_space<vmem>>, vector<1x8x128xf32>
    %34 = vector.shape_cast %33 : vector<1x8x128xf32> to vector<8x128xf32>
    %35 = arith.truncf %27 : vector<8x128xf32> to vector<8x128xbf16>
    %cst_27 = arith.constant dense<0.000000e+00> : vector<8x128xf32>
    %36 = tpu.matmul %35, %26, %cst_27 {dimension_numbers = #tpu.dot_dimension_numbers<[1], [0], [0], [1], [0, 0, 1, 1], [], []>} : vector<8x128xbf16>, vector<128x128xbf16>, vector<8x128xf32> -> vector<8x128xf32>
    %37 = arith.addf %34, %36 : vector<8x128xf32>
    %38 = math.tanh %37 : vector<8x128xf32>
    %39 = arith.subf %38, %27 : vector<8x128xf32>
    %40 = vector.broadcast %31 : vector<8x1xf32> to vector<8x128xf32>
    %41 = arith.mulf %40, %39 : vector<8x128xf32>
    %42 = arith.addf %27, %41 : vector<8x128xf32>
    %43 = vector.broadcast %31 : vector<8x1xf32> to vector<8x128xf32>
    %44 = arith.mulf %43, %42 : vector<8x128xf32>
    %45 = arith.addf %28, %44 : vector<8x128xf32>
    %c1_i32 = arith.constant 1 : i32
    %46 = arith.index_cast %c1_i32 : i32 to index
    %c0_28 = arith.constant 0 : index
    %c0_29 = arith.constant 0 : index
    %47 = vector.load %arg3[%46, %c0_28, %c0_29] : memref<8x8x1xf32, #tpu.memory_space<vmem>>, vector<1x8x1xf32>
    %48 = vector.shape_cast %47 : vector<1x8x1xf32> to vector<8x1xf32>
    %49 = arith.index_cast %c1_i32 : i32 to index
    %c0_30 = arith.constant 0 : index
    %c0_31 = arith.constant 0 : index
    %50 = vector.load %arg14[%49, %c0_30, %c0_31] : memref<8x8x128xf32, #tpu.memory_space<vmem>>, vector<1x8x128xf32>
    %51 = vector.shape_cast %50 : vector<1x8x128xf32> to vector<8x128xf32>
    %52 = arith.truncf %42 : vector<8x128xf32> to vector<8x128xbf16>
    %cst_32 = arith.constant dense<0.000000e+00> : vector<8x128xf32>
    %53 = tpu.matmul %52, %26, %cst_32 {dimension_numbers = #tpu.dot_dimension_numbers<[1], [0], [0], [1], [0, 0, 1, 1], [], []>} : vector<8x128xbf16>, vector<128x128xbf16>, vector<8x128xf32> -> vector<8x128xf32>
    %54 = arith.addf %51, %53 : vector<8x128xf32>
    %55 = math.tanh %54 : vector<8x128xf32>
    %56 = arith.subf %55, %42 : vector<8x128xf32>
    %57 = vector.broadcast %48 : vector<8x1xf32> to vector<8x128xf32>
    %58 = arith.mulf %57, %56 : vector<8x128xf32>
    %59 = arith.addf %42, %58 : vector<8x128xf32>
    %60 = vector.broadcast %48 : vector<8x1xf32> to vector<8x128xf32>
    %61 = arith.mulf %60, %59 : vector<8x128xf32>
    %62 = arith.addf %45, %61 : vector<8x128xf32>
    %c2_i32 = arith.constant 2 : i32
    %63 = arith.index_cast %c2_i32 : i32 to index
    %c0_33 = arith.constant 0 : index
    %c0_34 = arith.constant 0 : index
    %64 = vector.load %arg3[%63, %c0_33, %c0_34] : memref<8x8x1xf32, #tpu.memory_space<vmem>>, vector<1x8x1xf32>
    %65 = vector.shape_cast %64 : vector<1x8x1xf32> to vector<8x1xf32>
    %66 = arith.index_cast %c2_i32 : i32 to index
    %c0_35 = arith.constant 0 : index
    %c0_36 = arith.constant 0 : index
    %67 = vector.load %arg14[%66, %c0_35, %c0_36] : memref<8x8x128xf32, #tpu.memory_space<vmem>>, vector<1x8x128xf32>
    %68 = vector.shape_cast %67 : vector<1x8x128xf32> to vector<8x128xf32>
    %69 = arith.truncf %59 : vector<8x128xf32> to vector<8x128xbf16>
    %cst_37 = arith.constant dense<0.000000e+00> : vector<8x128xf32>
    %70 = tpu.matmul %69, %26, %cst_37 {dimension_numbers = #tpu.dot_dimension_numbers<[1], [0], [0], [1], [0, 0, 1, 1], [], []>} : vector<8x128xbf16>, vector<128x128xbf16>, vector<8x128xf32> -> vector<8x128xf32>
    %71 = arith.addf %68, %70 : vector<8x128xf32>
    %72 = math.tanh %71 : vector<8x128xf32>
    %73 = arith.subf %72, %59 : vector<8x128xf32>
    %74 = vector.broadcast %65 : vector<8x1xf32> to vector<8x128xf32>
    %75 = arith.mulf %74, %73 : vector<8x128xf32>
    %76 = arith.addf %59, %75 : vector<8x128xf32>
    %77 = vector.broadcast %65 : vector<8x1xf32> to vector<8x128xf32>
    %78 = arith.mulf %77, %76 : vector<8x128xf32>
    %79 = arith.addf %62, %78 : vector<8x128xf32>
    %c3_i32 = arith.constant 3 : i32
    %80 = arith.index_cast %c3_i32 : i32 to index
    %c0_38 = arith.constant 0 : index
    %c0_39 = arith.constant 0 : index
    %81 = vector.load %arg3[%80, %c0_38, %c0_39] : memref<8x8x1xf32, #tpu.memory_space<vmem>>, vector<1x8x1xf32>
    %82 = vector.shape_cast %81 : vector<1x8x1xf32> to vector<8x1xf32>
    %83 = arith.index_cast %c3_i32 : i32 to index
    %c0_40 = arith.constant 0 : index
    %c0_41 = arith.constant 0 : index
    %84 = vector.load %arg14[%83, %c0_40, %c0_41] : memref<8x8x128xf32, #tpu.memory_space<vmem>>, vector<1x8x128xf32>
    %85 = vector.shape_cast %84 : vector<1x8x128xf32> to vector<8x128xf32>
    %86 = arith.truncf %76 : vector<8x128xf32> to vector<8x128xbf16>
    %cst_42 = arith.constant dense<0.000000e+00> : vector<8x128xf32>
    %87 = tpu.matmul %86, %26, %cst_42 {dimension_numbers = #tpu.dot_dimension_numbers<[1], [0], [0], [1], [0, 0, 1, 1], [], []>} : vector<8x128xbf16>, vector<128x128xbf16>, vector<8x128xf32> -> vector<8x128xf32>
    %88 = arith.addf %85, %87 : vector<8x128xf32>
    %89 = math.tanh %88 : vector<8x128xf32>
    %90 = arith.subf %89, %76 : vector<8x128xf32>
    %91 = vector.broadcast %82 : vector<8x1xf32> to vector<8x128xf32>
    %92 = arith.mulf %91, %90 : vector<8x128xf32>
    %93 = arith.addf %76, %92 : vector<8x128xf32>
    %94 = vector.broadcast %82 : vector<8x1xf32> to vector<8x128xf32>
    %95 = arith.mulf %94, %93 : vector<8x128xf32>
    %96 = arith.addf %79, %95 : vector<8x128xf32>
    %c4_i32 = arith.constant 4 : i32
    %97 = arith.index_cast %c4_i32 : i32 to index
    %c0_43 = arith.constant 0 : index
    %c0_44 = arith.constant 0 : index
    %98 = vector.load %arg3[%97, %c0_43, %c0_44] : memref<8x8x1xf32, #tpu.memory_space<vmem>>, vector<1x8x1xf32>
    %99 = vector.shape_cast %98 : vector<1x8x1xf32> to vector<8x1xf32>
    %100 = arith.index_cast %c4_i32 : i32 to index
    %c0_45 = arith.constant 0 : index
    %c0_46 = arith.constant 0 : index
    %101 = vector.load %arg14[%100, %c0_45, %c0_46] : memref<8x8x128xf32, #tpu.memory_space<vmem>>, vector<1x8x128xf32>
    %102 = vector.shape_cast %101 : vector<1x8x128xf32> to vector<8x128xf32>
    %103 = arith.truncf %93 : vector<8x128xf32> to vector<8x128xbf16>
    %cst_47 = arith.constant dense<0.000000e+00> : vector<8x128xf32>
    %104 = tpu.matmul %103, %26, %cst_47 {dimension_numbers = #tpu.dot_dimension_numbers<[1], [0], [0], [1], [0, 0, 1, 1], [], []>} : vector<8x128xbf16>, vector<128x128xbf16>, vector<8x128xf32> -> vector<8x128xf32>
    %105 = arith.addf %102, %104 : vector<8x128xf32>
    %106 = math.tanh %105 : vector<8x128xf32>
    %107 = arith.subf %106, %93 : vector<8x128xf32>
    %108 = vector.broadcast %99 : vector<8x1xf32> to vector<8x128xf32>
    %109 = arith.mulf %108, %107 : vector<8x128xf32>
    %110 = arith.addf %93, %109 : vector<8x128xf32>
    %111 = vector.broadcast %99 : vector<8x1xf32> to vector<8x128xf32>
    %112 = arith.mulf %111, %110 : vector<8x128xf32>
    %113 = arith.addf %96, %112 : vector<8x128xf32>
    %c5_i32 = arith.constant 5 : i32
    %114 = arith.index_cast %c5_i32 : i32 to index
    %c0_48 = arith.constant 0 : index
    %c0_49 = arith.constant 0 : index
    %115 = vector.load %arg3[%114, %c0_48, %c0_49] : memref<8x8x1xf32, #tpu.memory_space<vmem>>, vector<1x8x1xf32>
    %116 = vector.shape_cast %115 : vector<1x8x1xf32> to vector<8x1xf32>
    %117 = arith.index_cast %c5_i32 : i32 to index
    %c0_50 = arith.constant 0 : index
    %c0_51 = arith.constant 0 : index
    %118 = vector.load %arg14[%117, %c0_50, %c0_51] : memref<8x8x128xf32, #tpu.memory_space<vmem>>, vector<1x8x128xf32>
    %119 = vector.shape_cast %118 : vector<1x8x128xf32> to vector<8x128xf32>
    %120 = arith.truncf %110 : vector<8x128xf32> to vector<8x128xbf16>
    %cst_52 = arith.constant dense<0.000000e+00> : vector<8x128xf32>
    %121 = tpu.matmul %120, %26, %cst_52 {dimension_numbers = #tpu.dot_dimension_numbers<[1], [0], [0], [1], [0, 0, 1, 1], [], []>} : vector<8x128xbf16>, vector<128x128xbf16>, vector<8x128xf32> -> vector<8x128xf32>
    %122 = arith.addf %119, %121 : vector<8x128xf32>
    %123 = math.tanh %122 : vector<8x128xf32>
    %124 = arith.subf %123, %110 : vector<8x128xf32>
    %125 = vector.broadcast %116 : vector<8x1xf32> to vector<8x128xf32>
    %126 = arith.mulf %125, %124 : vector<8x128xf32>
    %127 = arith.addf %110, %126 : vector<8x128xf32>
    %128 = vector.broadcast %116 : vector<8x1xf32> to vector<8x128xf32>
    %129 = arith.mulf %128, %127 : vector<8x128xf32>
    %130 = arith.addf %113, %129 : vector<8x128xf32>
    %c6_i32 = arith.constant 6 : i32
    %131 = arith.index_cast %c6_i32 : i32 to index
    %c0_53 = arith.constant 0 : index
    %c0_54 = arith.constant 0 : index
    %132 = vector.load %arg3[%131, %c0_53, %c0_54] : memref<8x8x1xf32, #tpu.memory_space<vmem>>, vector<1x8x1xf32>
    %133 = vector.shape_cast %132 : vector<1x8x1xf32> to vector<8x1xf32>
    %134 = arith.index_cast %c6_i32 : i32 to index
    %c0_55 = arith.constant 0 : index
    %c0_56 = arith.constant 0 : index
    %135 = vector.load %arg14[%134, %c0_55, %c0_56] : memref<8x8x128xf32, #tpu.memory_space<vmem>>, vector<1x8x128xf32>
    %136 = vector.shape_cast %135 : vector<1x8x128xf32> to vector<8x128xf32>
    %137 = arith.truncf %127 : vector<8x128xf32> to vector<8x128xbf16>
    %cst_57 = arith.constant dense<0.000000e+00> : vector<8x128xf32>
    %138 = tpu.matmul %137, %26, %cst_57 {dimension_numbers = #tpu.dot_dimension_numbers<[1], [0], [0], [1], [0, 0, 1, 1], [], []>} : vector<8x128xbf16>, vector<128x128xbf16>, vector<8x128xf32> -> vector<8x128xf32>
    %139 = arith.addf %136, %138 : vector<8x128xf32>
    %140 = math.tanh %139 : vector<8x128xf32>
    %141 = arith.subf %140, %127 : vector<8x128xf32>
    %142 = vector.broadcast %133 : vector<8x1xf32> to vector<8x128xf32>
    %143 = arith.mulf %142, %141 : vector<8x128xf32>
    %144 = arith.addf %127, %143 : vector<8x128xf32>
    %145 = vector.broadcast %133 : vector<8x1xf32> to vector<8x128xf32>
    %146 = arith.mulf %145, %144 : vector<8x128xf32>
    %147 = arith.addf %130, %146 : vector<8x128xf32>
    %c7_i32 = arith.constant 7 : i32
    %148 = arith.index_cast %c7_i32 : i32 to index
    %c0_58 = arith.constant 0 : index
    %c0_59 = arith.constant 0 : index
    %149 = vector.load %arg3[%148, %c0_58, %c0_59] : memref<8x8x1xf32, #tpu.memory_space<vmem>>, vector<1x8x1xf32>
    %150 = vector.shape_cast %149 : vector<1x8x1xf32> to vector<8x1xf32>
    %151 = arith.index_cast %c7_i32 : i32 to index
    %c0_60 = arith.constant 0 : index
    %c0_61 = arith.constant 0 : index
    %152 = vector.load %arg14[%151, %c0_60, %c0_61] : memref<8x8x128xf32, #tpu.memory_space<vmem>>, vector<1x8x128xf32>
    %153 = vector.shape_cast %152 : vector<1x8x128xf32> to vector<8x128xf32>
    %154 = arith.truncf %144 : vector<8x128xf32> to vector<8x128xbf16>
    %cst_62 = arith.constant dense<0.000000e+00> : vector<8x128xf32>
    %155 = tpu.matmul %154, %26, %cst_62 {dimension_numbers = #tpu.dot_dimension_numbers<[1], [0], [0], [1], [0, 0, 1, 1], [], []>} : vector<8x128xbf16>, vector<128x128xbf16>, vector<8x128xf32> -> vector<8x128xf32>
    %156 = arith.addf %153, %155 : vector<8x128xf32>
    %157 = math.tanh %156 : vector<8x128xf32>
    %158 = arith.subf %157, %144 : vector<8x128xf32>
    %159 = vector.broadcast %150 : vector<8x1xf32> to vector<8x128xf32>
    %160 = arith.mulf %159, %158 : vector<8x128xf32>
    %161 = arith.addf %144, %160 : vector<8x128xf32>
    %162 = vector.broadcast %150 : vector<8x1xf32> to vector<8x128xf32>
    %163 = arith.mulf %162, %161 : vector<8x128xf32>
    %164 = arith.addf %147, %163 : vector<8x128xf32>
    %c8_i32 = arith.constant 8 : i32
    %c0_63 = arith.constant 0 : index
    %c0_64 = arith.constant 0 : index
    %165 = vector.load %arg12[%c0_63, %c0_64] : memref<8x128xf32, #tpu.memory_space<vmem>>, vector<8x128xf32>
    tpu.vector_store %arg12[%c0_63, %c0_64], %161 {strides = array<i32>} : memref<8x128xf32, #tpu.memory_space<vmem>>, vector<8x128xf32>,
    %c0_65 = arith.constant 0 : index
    %c0_66 = arith.constant 0 : index
    %166 = vector.load %arg13[%c0_65, %c0_66] : memref<8x128xf32, #tpu.memory_space<vmem>>, vector<8x128xf32>
    %167 = arith.addf %166, %164 : vector<8x128xf32>
    %168 = arith.addf %167, %25 : vector<8x128xf32>
    %c0_67 = arith.constant 0 : index
    %c0_68 = arith.constant 0 : index
    %169 = vector.load %arg13[%c0_67, %c0_68] : memref<8x128xf32, #tpu.memory_space<vmem>>, vector<8x128xf32>
    tpu.vector_store %arg13[%c0_67, %c0_68], %168 {strides = array<i32>} : memref<8x128xf32, #tpu.memory_space<vmem>>, vector<8x128xf32>,
    %c0_i32_69 = arith.constant 0 : i32
    %170 = arith.cmpi eq, %arg1, %c0_i32_69 : i32
    %171 = arith.extui %170 : i1 to i32
    %c0_i32_70 = arith.constant 0 : i32
    %172 = arith.cmpi ne, %171, %c0_i32_70 : i32
    scf.if %172 {
      %c0_71 = arith.constant 0 : index
      %c0_72 = arith.constant 0 : index
      %173 = vector.load %arg13[%c0_71, %c0_72] : memref<8x128xf32, #tpu.memory_space<vmem>>, vector<8x128xf32>
      %c0_73 = arith.constant 0 : index
      %c0_74 = arith.constant 0 : index
      %174 = vector.load %arg10[%c0_73, %c0_74] : memref<8x1xf32, #tpu.memory_space<vmem>>, vector<8x1xf32>
      %175 = vector.broadcast %174 : vector<8x1xf32> to vector<8x128xf32>
      %176 = arith.mulf %173, %175 : vector<8x128xf32>
      %177 = arith.truncf %176 : vector<8x128xf32> to vector<8x128xbf16>
      %c0_75 = arith.constant 0 : index
      %c0_76 = arith.constant 0 : index
      %178 = vector.load %arg8[%c0_75, %c0_76] : memref<128x128xbf16, #tpu.memory_space<vmem>>, vector<128x128xbf16>
      %cst_77 = arith.constant dense<0.000000e+00> : vector<8x128xf32>
      %179 = tpu.matmul %177, %178, %cst_77 {dimension_numbers = #tpu.dot_dimension_numbers<[1], [0], [0], [1], [0, 0, 1, 1], [], []>} : vector<8x128xbf16>, vector<128x128xbf16>, vector<8x128xf32> -> vector<8x128xf32>
      %c0_78 = arith.constant 0 : index
      %c0_79 = arith.constant 0 : index
      %180 = vector.load %arg9[%c0_78, %c0_79] : memref<1x128xf32, #tpu.memory_space<vmem>>, vector<1x128xf32>
      %181 = vector.broadcast %180 : vector<1x128xf32> to vector<8x128xf32>
      %182 = arith.addf %179, %181 : vector<8x128xf32>
      %c0_80 = arith.constant 0 : index
      %c0_81 = arith.constant 0 : index
      %183 = vector.load %arg11[%c0_80, %c0_81] : memref<8x128xf32, #tpu.memory_space<vmem>>, vector<8x128xf32>
      tpu.vector_store %arg11[%c0_80, %c0_81], %182 {strides = array<i32>} : memref<8x128xf32, #tpu.memory_space<vmem>>, vector<8x128xf32>,
    } else {
    }
    return
  }
  func.func @transform_0(%arg0: i32, %arg1: i32) -> (i32, i32, i32) {
    %c0_i32 = arith.constant 0 : i32
    %c0_i32_0 = arith.constant 0 : i32
    return %arg1, %arg0, %c0_i32 : i32, i32, i32
  }
  func.func @transform_1(%arg0: i32, %arg1: i32) -> (i32, i32, i32) {
    %c0_i32 = arith.constant 0 : i32
    %c0_i32_0 = arith.constant 0 : i32
    return %arg1, %arg0, %c0_i32 : i32, i32, i32
  }
  func.func @transform_2(%arg0: i32, %arg1: i32) -> (i32, i32) {
    %c0_i32 = arith.constant 0 : i32
    %c0_i32_0 = arith.constant 0 : i32
    %c0_i32_1 = arith.constant 0 : i32
    return %c0_i32, %c0_i32_0 : i32, i32
  }
  func.func @transform_3(%arg0: i32, %arg1: i32) -> (i32, i32) {
    %c0_i32 = arith.constant 0 : i32
    %c0_i32_0 = arith.constant 0 : i32
    %c0_i32_1 = arith.constant 0 : i32
    return %c0_i32, %c0_i32_0 : i32, i32
  }
  func.func @transform_4(%arg0: i32, %arg1: i32) -> (i32, i32) {
    %c0_i32 = arith.constant 0 : i32
    %c0_i32_0 = arith.constant 0 : i32
    %c0_i32_1 = arith.constant 0 : i32
    return %c0_i32, %c0_i32_0 : i32, i32
  }
  func.func @transform_5(%arg0: i32, %arg1: i32) -> (i32, i32) {
    %c0_i32 = arith.constant 0 : i32
    %c0_i32_0 = arith.constant 0 : i32
    %c0_i32_1 = arith.constant 0 : i32
    return %c0_i32, %c0_i32_0 : i32, i32
  }
  func.func @transform_6(%arg0: i32, %arg1: i32) -> (i32, i32) {
    %c0_i32 = arith.constant 0 : i32
    %c0_i32_0 = arith.constant 0 : i32
    %c0_i32_1 = arith.constant 0 : i32
    return %c0_i32, %c0_i32_0 : i32, i32
  }
  func.func @transform_7(%arg0: i32, %arg1: i32) -> (i32, i32) {
    %c0_i32 = arith.constant 0 : i32
    %c0_i32_0 = arith.constant 0 : i32
    %c0_i32_1 = arith.constant 0 : i32
    return %c0_i32, %c0_i32_0 : i32, i32
  }
  func.func @transform_8(%arg0: i32, %arg1: i32) -> (i32, i32) {
    %c0_i32 = arith.constant 0 : i32
    %c0_i32_0 = arith.constant 0 : i32
    return %arg0, %c0_i32 : i32, i32
  }
  func.func @transform_9(%arg0: i32, %arg1: i32) -> (i32, i32) {
    %c0_i32 = arith.constant 0 : i32
    %c0_i32_0 = arith.constant 0 : i32
    return %arg0, %c0_i32 : i32, i32
  }
}

</mosaic_0001>

<llo_original>
// kernel: custom_rnn_forward.1
$region0: #{custom_rnn_forward.1}
  #allocation0 [shape = 'u32[]', space=smem, size = 0x4, offset = 0x4, fixed_abs, tag = 'smem constant byte address 0x4 - core index']
  #allocation1 [shape = 'u32[144,128]{1,0:T(1,128)}', space=vmem, size = 0x12000, scoped, tag = 'internal scratch']
  #allocation2 [shape = 'f32[8,128]{1,0:T(8,128)}', space=vmem, size = 0x1000, scoped, tag = 'scratch operand']
  #allocation3 [shape = 'f32[8,128]{1,0:T(8,128)}', space=vmem, size = 0x1000, scoped, tag = 'scratch operand']
  #allocation4 [shape = 'f32[8,8,128]{2,1,0:T(8,128)}', space=vmem, size = 0x8000, scoped, tag = 'scratch operand']
  %s0 = inlined_call_operand.vmem [shape: s32[8,8,1], index: 0, kind: input, shape index: {}]
  %s1 = inlined_call_operand.vmem [shape: f32[8,8,1], index: 1, kind: input, shape index: {}]
  %s2 = inlined_call_operand.vmem [shape: f32[512,128], index: 2, kind: input, shape index: {}]
  %s3 = inlined_call_operand.vmem [shape: bf16[512,128], index: 3, kind: input, shape index: {}]
  %s4 = inlined_call_operand.vmem [shape: bf16[128,128], index: 4, kind: input, shape index: {}]
  %s5 = inlined_call_operand.vmem [shape: f32[1,128], index: 5, kind: input, shape index: {}]
  %s6 = inlined_call_operand.vmem [shape: bf16[128,128], index: 6, kind: input, shape index: {}]
  %s7 = inlined_call_operand.vmem [shape: f32[1,128], index: 7, kind: input, shape index: {}]
  %s8 = inlined_call_operand.vmem [shape: f32[8,1], index: 8, kind: input, shape index: {}]
  %s9 = inlined_call_operand.vmem [shape: f32[8,128], index: 9, kind: output, shape index: {}]
  %s10 = sld [smem:[#allocation0]]
  $region54: #{custom_rnn_forward.1} parent=0
    _
  %s12 = ssub.s32 1, %s10
  %s13 = scalar_select 0, %s12, %s10
  // Predicated region
  $region2: #{custom_rnn_forward.1} parent=0 // pred_check
    _
  $region3: #{custom_rnn_forward.1} parent=0 // pred_check_branch
    %15 = sbr.rel (0) target = $region5
  $region4: #{custom_rnn_forward.1} parent=0 // pred_region
    _
  $region5: #{custom_rnn_forward.1} parent=0 // pred_fallthru
    _
  // Predicated region
  $region6: #{custom_rnn_forward.1} parent=0 // pred_check
    _
  $region7: #{custom_rnn_forward.1} parent=0 // pred_check_branch
    %17 = sbr.rel (0) target = $region9
  $region8: #{custom_rnn_forward.1} parent=0 // pred_region
    _
  $region9: #{custom_rnn_forward.1} parent=0 // pred_fallthru
    _
  // Predicated region
  $region10: #{custom_rnn_forward.1} parent=0 // pred_check
    _
  $region11: #{custom_rnn_forward.1} parent=0 // pred_check_branch
    %19 = sbr.rel (0) target = $region13
  $region12: #{custom_rnn_forward.1} parent=0 // pred_region
    _
  $region13: #{custom_rnn_forward.1} parent=0 // pred_fallthru
    _
  // Predicated region
  $region14: #{custom_rnn_forward.1} parent=0 // pred_check
    _
  $region15: #{custom_rnn_forward.1} parent=0 // pred_check_branch
    %21 = sbr.rel (0) target = $region17
  $region16: #{custom_rnn_forward.1} parent=0 // pred_region
    _
  $region17: #{custom_rnn_forward.1} parent=0 // pred_fallthru
    _
  // Predicated region
  $region18: #{custom_rnn_forward.1} parent=0 // pred_check
    _
  $region19: #{custom_rnn_forward.1} parent=0 // pred_check_branch
    %23 = sbr.rel (0) target = $region21
  $region20: #{custom_rnn_forward.1} parent=0 // pred_region
    _
  $region21: #{custom_rnn_forward.1} parent=0 // pred_fallthru
    _
  // Predicated region
  $region22: #{custom_rnn_forward.1} parent=0 // pred_check
    _
  $region23: #{custom_rnn_forward.1} parent=0 // pred_check_branch
    %25 = sbr.rel (0) target = $region25
  $region24: #{custom_rnn_forward.1} parent=0 // pred_region
    _
  $region25: #{custom_rnn_forward.1} parent=0 // pred_fallthru
    _
  // Predicated region
  $region26: #{custom_rnn_forward.1} parent=0 // pred_check
    _
  $region27: #{custom_rnn_forward.1} parent=0 // pred_check_branch
    %27 = sbr.rel (0) target = $region29
  $region28: #{custom_rnn_forward.1} parent=0 // pred_region
    _
  $region29: #{custom_rnn_forward.1} parent=0 // pred_fallthru
    _
  // Predicated region
  $region30: #{custom_rnn_forward.1} parent=0 // pred_check
    _
  $region31: #{custom_rnn_forward.1} parent=0 // pred_check_branch
    %29 = sbr.rel (0) target = $region33
  $region32: #{custom_rnn_forward.1} parent=0 // pred_region
    _
  $region33: #{custom_rnn_forward.1} parent=0 // pred_fallthru
    _
  // Predicated region
  $region34: #{custom_rnn_forward.1} parent=0 // pred_check
    _
  $region35: #{custom_rnn_forward.1} parent=0 // pred_check_branch
    %31 = sbr.rel (0) target = $region37
  $region36: #{custom_rnn_forward.1} parent=0 // pred_region
    _
  $region37: #{custom_rnn_forward.1} parent=0 // pred_fallthru
    _
  %p33 = scmp.eq.s32.totalorder 0, 0
  // Predicated region
  $region38: #{custom_rnn_forward.1} parent=0 // pred_check
    %p34 = pneg %p33
  $region39: #{custom_rnn_forward.1} parent=0 // pred_check_branch
    %36 = sbr.rel (%p34) target = $region41
  $region40: #{custom_rnn_forward.1} parent=0 // pred_region
    %37 = vst [vmem:[#allocation2] sm:$0xff] 0.0
    %38 = vst [vmem:[#allocation3] sm:$0xff] 0.0
  $region41: #{custom_rnn_forward.1} parent=0 // pred_fallthru
    _
  %v39 = vld [vmem:[%s0] sm:$0xff]
  %v40 = vld [vmem:[%s0 + $0x8] sm:$0xff]
  %v41 = vld [vmem:[%s0 + $0x10] sm:$0xff]
  %v42 = vld [vmem:[%s0 + $0x18] sm:$0xff]
  %v43 = vld [vmem:[%s0 + $0x20] sm:$0xff]
  %v44 = vld [vmem:[%s0 + $0x28] sm:$0xff]
  %v45 = vld [vmem:[%s0 + $0x30] sm:$0xff]
  %v46 = vld [vmem:[%s0 + $0x38] sm:$0xff]
  %v47 = vld [vmem:[%s1] sm:$0xff]
  %v48 = vld [vmem:[%s1 + $0x8] sm:$0xff]
  %v49 = vld [vmem:[%s1 + $0x10] sm:$0xff]
  %v50 = vld [vmem:[%s1 + $0x18] sm:$0xff]
  %v51 = vld [vmem:[%s1 + $0x20] sm:$0xff]
  %v52 = vld [vmem:[%s1 + $0x28] sm:$0xff]
  %v53 = vld [vmem:[%s1 + $0x30] sm:$0xff]
  %v54 = vld [vmem:[%s1 + $0x38] sm:$0xff]
  %v55 = vlaneseq
  %v56 = vand.u32 %v55, 127
  %v57 = vadd.s32 %v56, 128
  %v58 = vadd.s32 %v56, 256
  %v59 = vadd.s32 %v56, 384
  %60 = vset.pattern.permute.xlu0 0
  %61 = vperm.xlu0 %60, %v39
  %v62 = vpop.permute.xlu0 %61
  %63 = vset.pattern.permute.xlu0 0
  %64 = vperm.xlu0 %63, %v40
  %v65 = vpop.permute.xlu0 %64
  %66 = vset.pattern.permute.xlu0 0
  %67 = vperm.xlu0 %66, %v41
  %v68 = vpop.permute.xlu0 %67
  %69 = vset.pattern.permute.xlu0 0
  %70 = vperm.xlu0 %69, %v42
  %v71 = vpop.permute.xlu0 %70
  %72 = vset.pattern.permute.xlu0 0
  %73 = vperm.xlu0 %72, %v43
  %v74 = vpop.permute.xlu0 %73
  %75 = vset.pattern.permute.xlu0 0
  %76 = vperm.xlu0 %75, %v44
  %v77 = vpop.permute.xlu0 %76
  %78 = vset.pattern.permute.xlu0 0
  %79 = vperm.xlu0 %78, %v45
  %v80 = vpop.permute.xlu0 %79
  %81 = vset.pattern.permute.xlu0 0
  %82 = vperm.xlu0 %81, %v46
  %v83 = vpop.permute.xlu0 %82
  %vm84 = vcmp.eq.s32.totalorder %v62, %v56
  %vm85 = vcmp.eq.s32.totalorder %v62, %v57
  %vm86 = vcmp.eq.s32.totalorder %v62, %v58
  %vm87 = vcmp.eq.s32.totalorder %v62, %v59
  %vm88 = vcmp.eq.s32.totalorder %v65, %v56
  %vm89 = vcmp.eq.s32.totalorder %v65, %v57
  %vm90 = vcmp.eq.s32.totalorder %v65, %v58
  %vm91 = vcmp.eq.s32.totalorder %v65, %v59
  %vm92 = vcmp.eq.s32.totalorder %v68, %v56
  %vm93 = vcmp.eq.s32.totalorder %v68, %v57
  %vm94 = vcmp.eq.s32.totalorder %v68, %v58
  %vm95 = vcmp.eq.s32.totalorder %v68, %v59
  %vm96 = vcmp.eq.s32.totalorder %v71, %v56
  %vm97 = vcmp.eq.s32.totalorder %v71, %v57
  %vm98 = vcmp.eq.s32.totalorder %v71, %v58
  %vm99 = vcmp.eq.s32.totalorder %v71, %v59
  %vm100 = vcmp.eq.s32.totalorder %v74, %v56
  %vm101 = vcmp.eq.s32.totalorder %v74, %v57
  %vm102 = vcmp.eq.s32.totalorder %v74, %v58
  %vm103 = vcmp.eq.s32.totalorder %v74, %v59
  %vm104 = vcmp.eq.s32.totalorder %v77, %v56
  %vm105 = vcmp.eq.s32.totalorder %v77, %v57
  %vm106 = vcmp.eq.s32.totalorder %v77, %v58
  %vm107 = vcmp.eq.s32.totalorder %v77, %v59
  %vm108 = vcmp.eq.s32.totalorder %v80, %v56
  %vm109 = vcmp.eq.s32.totalorder %v80, %v57
  %vm110 = vcmp.eq.s32.totalorder %v80, %v58
  %vm111 = vcmp.eq.s32.totalorder %v80, %v59
  %vm112 = vcmp.eq.s32.totalorder %v83, %v56
  %vm113 = vcmp.eq.s32.totalorder %v83, %v57
  %vm114 = vcmp.eq.s32.totalorder %v83, %v58
  %vm115 = vcmp.eq.s32.totalorder %v83, %v59
  %v116 = vsel %vm84, 1, 0
  %v117 = vsel %vm85, 1, 0
  %v118 = vsel %vm86, 1, 0
  %v119 = vsel %vm87, 1, 0
  %v120 = vsel %vm88, 1, 0
  %v121 = vsel %vm89, 1, 0
  %v122 = vsel %vm90, 1, 0
  %v123 = vsel %vm91, 1, 0
  %v124 = vsel %vm92, 1, 0
  %v125 = vsel %vm93, 1, 0
  %v126 = vsel %vm94, 1, 0
  %v127 = vsel %vm95, 1, 0
  %v128 = vsel %vm96, 1, 0
  %v129 = vsel %vm97, 1, 0
  %v130 = vsel %vm98, 1, 0
  %v131 = vsel %vm99, 1, 0
  %v132 = vsel %vm100, 1, 0
  %v133 = vsel %vm101, 1, 0
  %v134 = vsel %vm102, 1, 0
  %v135 = vsel %vm103, 1, 0
  %v136 = vsel %vm104, 1, 0
  %v137 = vsel %vm105, 1, 0
  %v138 = vsel %vm106, 1, 0
  %v139 = vsel %vm107, 1, 0
  %v140 = vsel %vm108, 1, 0
  %v141 = vsel %vm109, 1, 0
  %v142 = vsel %vm110, 1, 0
  %v143 = vsel %vm111, 1, 0
  %v144 = vsel %vm112, 1, 0
  %v145 = vsel %vm113, 1, 0
  %v146 = vsel %vm114, 1, 0
  %v147 = vsel %vm115, 1, 0
  %v148 = vcvt.s32.f32 %v116
  %v149 = vcvt.s32.f32 %v117
  %v150 = vcvt.s32.f32 %v118
  %v151 = vcvt.s32.f32 %v119
  %v152 = vcvt.s32.f32 %v120
  %v153 = vcvt.s32.f32 %v121
  %v154 = vcvt.s32.f32 %v122
  %v155 = vcvt.s32.f32 %v123
  %v156 = vcvt.s32.f32 %v124
  %v157 = vcvt.s32.f32 %v125
  %v158 = vcvt.s32.f32 %v126
  %v159 = vcvt.s32.f32 %v127
  %v160 = vcvt.s32.f32 %v128
  %v161 = vcvt.s32.f32 %v129
  %v162 = vcvt.s32.f32 %v130
  %v163 = vcvt.s32.f32 %v131
  %v164 = vcvt.s32.f32 %v132
  %v165 = vcvt.s32.f32 %v133
  %v166 = vcvt.s32.f32 %v134
  %v167 = vcvt.s32.f32 %v135
  %v168 = vcvt.s32.f32 %v136
  %v169 = vcvt.s32.f32 %v137
  %v170 = vcvt.s32.f32 %v138
  %v171 = vcvt.s32.f32 %v139
  %v172 = vcvt.s32.f32 %v140
  %v173 = vcvt.s32.f32 %v141
  %v174 = vcvt.s32.f32 %v142
  %v175 = vcvt.s32.f32 %v143
  %v176 = vcvt.s32.f32 %v144
  %v177 = vcvt.s32.f32 %v145
  %v178 = vcvt.s32.f32 %v146
  %v179 = vcvt.s32.f32 %v147
  %181 = vset.pattern.permute.xlu0 0
  %182 = vperm.xlu0 %181, %v47
  %v183 = vpop.permute.xlu0 %182
  %186 = vset.pattern.permute.xlu0 0
  %187 = vperm.xlu0 %186, %v48
  %v188 = vpop.permute.xlu0 %187
  %191 = vset.pattern.permute.xlu0 0
  %192 = vperm.xlu0 %191, %v49
  %v193 = vpop.permute.xlu0 %192
  %196 = vset.pattern.permute.xlu0 0
  %197 = vperm.xlu0 %196, %v50
  %v198 = vpop.permute.xlu0 %197
  %201 = vset.pattern.permute.xlu0 0
  %202 = vperm.xlu0 %201, %v51
  %v203 = vpop.permute.xlu0 %202
  %206 = vset.pattern.permute.xlu0 0
  %207 = vperm.xlu0 %206, %v52
  %v208 = vpop.permute.xlu0 %207
  %211 = vset.pattern.permute.xlu0 0
  %212 = vperm.xlu0 %211, %v53
  %v213 = vpop.permute.xlu0 %212
  %216 = vset.pattern.permute.xlu0 0
  %217 = vperm.xlu0 %216, %v54
  %v218 = vpop.permute.xlu0 %217
  %v220 = vmul.f32 %v148, %v183
  %v221 = vmul.f32 %v149, %v183
  %v222 = vmul.f32 %v150, %v183
  %v223 = vmul.f32 %v151, %v183
  %v224 = vmul.f32 %v152, %v188
  %v225 = vmul.f32 %v153, %v188
  %v226 = vmul.f32 %v154, %v188
  %v227 = vmul.f32 %v155, %v188
  %v228 = vmul.f32 %v156, %v193
  %v229 = vmul.f32 %v157, %v193
  %v230 = vmul.f32 %v158, %v193
  %v231 = vmul.f32 %v159, %v193
  %v232 = vmul.f32 %v160, %v198
  %v233 = vmul.f32 %v161, %v198
  %v234 = vmul.f32 %v162, %v198
  %v235 = vmul.f32 %v163, %v198
  %v236 = vmul.f32 %v164, %v203
  %v237 = vmul.f32 %v165, %v203
  %v238 = vmul.f32 %v166, %v203
  %v239 = vmul.f32 %v167, %v203
  %v240 = vmul.f32 %v168, %v208
  %v241 = vmul.f32 %v169, %v208
  %v242 = vmul.f32 %v170, %v208
  %v243 = vmul.f32 %v171, %v208
  %v244 = vmul.f32 %v172, %v213
  %v245 = vmul.f32 %v173, %v213
  %v246 = vmul.f32 %v174, %v213
  %v247 = vmul.f32 %v175, %v213
  %v248 = vmul.f32 %v176, %v218
  %v249 = vmul.f32 %v177, %v218
  %v250 = vmul.f32 %v178, %v218
  %v251 = vmul.f32 %v179, %v218
  %v252 = vpack.c.bf16 %v224, %v220
  %v253 = vpack.c.bf16 %v225, %v221
  %v254 = vpack.c.bf16 %v226, %v222
  %v255 = vpack.c.bf16 %v227, %v223
  %v256 = vpack.c.bf16 %v232, %v228
  %v257 = vpack.c.bf16 %v233, %v229
  %v258 = vpack.c.bf16 %v234, %v230
  %v259 = vpack.c.bf16 %v235, %v231
  %v260 = vpack.c.bf16 %v240, %v236
  %v261 = vpack.c.bf16 %v241, %v237
  %v262 = vpack.c.bf16 %v242, %v238
  %v263 = vpack.c.bf16 %v243, %v239
  %v264 = vpack.c.bf16 %v248, %v244
  %v265 = vpack.c.bf16 %v249, %v245
  %v266 = vpack.c.bf16 %v250, %v246
  %v267 = vpack.c.bf16 %v251, %v247
  %v268 = vld [vmem:[%s3] sm:$0xf]
  %v269 = vld [vmem:[%s3 + $0x4] sm:$0xf]
  %v270 = vld [vmem:[%s3 + $0x8] sm:$0xf]
  %v271 = vld [vmem:[%s3 + $0xc] sm:$0xf]
  %v272 = vld [vmem:[%s3 + $0x10] sm:$0xf]
  %v273 = vld [vmem:[%s3 + $0x14] sm:$0xf]
  %v274 = vld [vmem:[%s3 + $0x18] sm:$0xf]
  %v275 = vld [vmem:[%s3 + $0x1c] sm:$0xf]
  %v276 = vld [vmem:[%s3 + $0x20] sm:$0xf]
  %v277 = vld [vmem:[%s3 + $0x24] sm:$0xf]
  %v278 = vld [vmem:[%s3 + $0x28] sm:$0xf]
  %v279 = vld [vmem:[%s3 + $0x2c] sm:$0xf]
  %v280 = vld [vmem:[%s3 + $0x30] sm:$0xf]
  %v281 = vld [vmem:[%s3 + $0x34] sm:$0xf]
  %v282 = vld [vmem:[%s3 + $0x38] sm:$0xf]
  %v283 = vld [vmem:[%s3 + $0x3c] sm:$0xf]
  %v284 = vld [vmem:[%s3 + $0x40] sm:$0xf]
  %v285 = vld [vmem:[%s3 + $0x44] sm:$0xf]
  %v286 = vld [vmem:[%s3 + $0x48] sm:$0xf]
  %v287 = vld [vmem:[%s3 + $0x4c] sm:$0xf]
  %v288 = vld [vmem:[%s3 + $0x50] sm:$0xf]
  %v289 = vld [vmem:[%s3 + $0x54] sm:$0xf]
  %v290 = vld [vmem:[%s3 + $0x58] sm:$0xf]
  %v291 = vld [vmem:[%s3 + $0x5c] sm:$0xf]
  %v292 = vld [vmem:[%s3 + $0x60] sm:$0xf]
  %v293 = vld [vmem:[%s3 + $0x64] sm:$0xf]
  %v294 = vld [vmem:[%s3 + $0x68] sm:$0xf]
  %v295 = vld [vmem:[%s3 + $0x6c] sm:$0xf]
  %v296 = vld [vmem:[%s3 + $0x70] sm:$0xf]
  %v297 = vld [vmem:[%s3 + $0x74] sm:$0xf]
  %v298 = vld [vmem:[%s3 + $0x78] sm:$0xf]
  %v299 = vld [vmem:[%s3 + $0x7c] sm:$0xf]
  %v300 = vld [vmem:[%s3 + $0x80] sm:$0xf]
  %v301 = vld [vmem:[%s3 + $0x84] sm:$0xf]
  %v302 = vld [vmem:[%s3 + $0x88] sm:$0xf]
  %v303 = vld [vmem:[%s3 + $0x8c] sm:$0xf]
  %v304 = vld [vmem:[%s3 + $0x90] sm:$0xf]
  %v305 = vld [vmem:[%s3 + $0x94] sm:$0xf]
  %v306 = vld [vmem:[%s3 + $0x98] sm:$0xf]
  %v307 = vld [vmem:[%s3 + $0x9c] sm:$0xf]
  %v308 = vld [vmem:[%s3 + $0xa0] sm:$0xf]
  %v309 = vld [vmem:[%s3 + $0xa4] sm:$0xf]
  %v310 = vld [vmem:[%s3 + $0xa8] sm:$0xf]
  %v311 = vld [vmem:[%s3 + $0xac] sm:$0xf]
  %v312 = vld [vmem:[%s3 + $0xb0] sm:$0xf]
  %v313 = vld [vmem:[%s3 + $0xb4] sm:$0xf]
  %v314 = vld [vmem:[%s3 + $0xb8] sm:$0xf]
  %v315 = vld [vmem:[%s3 + $0xbc] sm:$0xf]
  %v316 = vld [vmem:[%s3 + $0xc0] sm:$0xf]
  %v317 = vld [vmem:[%s3 + $0xc4] sm:$0xf]
  %v318 = vld [vmem:[%s3 + $0xc8] sm:$0xf]
  %v319 = vld [vmem:[%s3 + $0xcc] sm:$0xf]
  %v320 = vld [vmem:[%s3 + $0xd0] sm:$0xf]
  %v321 = vld [vmem:[%s3 + $0xd4] sm:$0xf]
  %v322 = vld [vmem:[%s3 + $0xd8] sm:$0xf]
  %v323 = vld [vmem:[%s3 + $0xdc] sm:$0xf]
  %v324 = vld [vmem:[%s3 + $0xe0] sm:$0xf]
  %v325 = vld [vmem:[%s3 + $0xe4] sm:$0xf]
  %v326 = vld [vmem:[%s3 + $0xe8] sm:$0xf]
  %v327 = vld [vmem:[%s3 + $0xec] sm:$0xf]
  %v328 = vld [vmem:[%s3 + $0xf0] sm:$0xf]
  %v329 = vld [vmem:[%s3 + $0xf4] sm:$0xf]
  %v330 = vld [vmem:[%s3 + $0xf8] sm:$0xf]
  %v331 = vld [vmem:[%s3 + $0xfc] sm:$0xf]
  %v332 = vld [vmem:[%s5] sm:$0x1]
  %v334 = vlaneseq
  %v335 = vshrl.u32 %v334, 7
  %v336 = vsub.s32 0, %v335
  %v337 = vrot.slane %v332, %v336
  %v403 = vunpack.c.l.b16 %v268
  %v404 = vunpack.c.l.b16 %v269
  %v405 = vunpack.c.l.b16 %v270
  %v406 = vunpack.c.l.b16 %v271
  %v407 = vunpack.c.l.b16 %v272
  %v408 = vunpack.c.l.b16 %v273
  %v409 = vunpack.c.l.b16 %v274
  %v410 = vunpack.c.l.b16 %v275
  %v411 = vunpack.c.l.b16 %v276
  %v412 = vunpack.c.l.b16 %v277
  %v413 = vunpack.c.l.b16 %v278
  %v414 = vunpack.c.l.b16 %v279
  %v415 = vunpack.c.l.b16 %v280
  %v416 = vunpack.c.l.b16 %v281
  %v417 = vunpack.c.l.b16 %v282
  %v418 = vunpack.c.l.b16 %v283
  %v419 = vunpack.c.l.b16 %v284
  %v420 = vunpack.c.l.b16 %v285
  %v421 = vunpack.c.l.b16 %v286
  %v422 = vunpack.c.l.b16 %v287
  %v423 = vunpack.c.l.b16 %v288
  %v424 = vunpack.c.l.b16 %v289
  %v425 = vunpack.c.l.b16 %v290
  %v426 = vunpack.c.l.b16 %v291
  %v427 = vunpack.c.l.b16 %v292
  %v428 = vunpack.c.l.b16 %v293
  %v429 = vunpack.c.l.b16 %v294
  %v430 = vunpack.c.l.b16 %v295
  %v431 = vunpack.c.l.b16 %v296
  %v432 = vunpack.c.l.b16 %v297
  %v433 = vunpack.c.l.b16 %v298
  %v434 = vunpack.c.l.b16 %v299
  %v435 = vunpack.c.l.b16 %v300
  %v436 = vunpack.c.l.b16 %v301
  %v437 = vunpack.c.l.b16 %v302
  %v438 = vunpack.c.l.b16 %v303
  %v439 = vunpack.c.l.b16 %v304
  %v440 = vunpack.c.l.b16 %v305
  %v441 = vunpack.c.l.b16 %v306
  %v442 = vunpack.c.l.b16 %v307
  %v443 = vunpack.c.l.b16 %v308
  %v444 = vunpack.c.l.b16 %v309
  %v445 = vunpack.c.l.b16 %v310
  %v446 = vunpack.c.l.b16 %v311
  %v447 = vunpack.c.l.b16 %v312
  %v448 = vunpack.c.l.b16 %v313
  %v449 = vunpack.c.l.b16 %v314
  %v450 = vunpack.c.l.b16 %v315
  %v451 = vunpack.c.l.b16 %v316
  %v452 = vunpack.c.l.b16 %v317
  %v453 = vunpack.c.l.b16 %v318
  %v454 = vunpack.c.l.b16 %v319
  %v455 = vunpack.c.l.b16 %v320
  %v456 = vunpack.c.l.b16 %v321
  %v457 = vunpack.c.l.b16 %v322
  %v458 = vunpack.c.l.b16 %v323
  %v459 = vunpack.c.l.b16 %v324
  %v460 = vunpack.c.l.b16 %v325
  %v461 = vunpack.c.l.b16 %v326
  %v462 = vunpack.c.l.b16 %v327
  %v463 = vunpack.c.l.b16 %v328
  %v464 = vunpack.c.l.b16 %v329
  %v465 = vunpack.c.l.b16 %v330
  %v466 = vunpack.c.l.b16 %v331
  %v467 = vpack.c.b16 %v404, %v403
  %v468 = vpack.c.b16 %v406, %v405
  %v469 = vpack.c.b16 %v408, %v407
  %v470 = vpack.c.b16 %v410, %v409
  %v471 = vpack.c.b16 %v412, %v411
  %v472 = vpack.c.b16 %v414, %v413
  %v473 = vpack.c.b16 %v416, %v415
  %v474 = vpack.c.b16 %v418, %v417
  %v475 = vpack.c.b16 %v420, %v419
  %v476 = vpack.c.b16 %v422, %v421
  %v477 = vpack.c.b16 %v424, %v423
  %v478 = vpack.c.b16 %v426, %v425
  %v479 = vpack.c.b16 %v428, %v427
  %v480 = vpack.c.b16 %v430, %v429
  %v481 = vpack.c.b16 %v432, %v431
  %v482 = vpack.c.b16 %v434, %v433
  %v483 = vpack.c.b16 %v436, %v435
  %v484 = vpack.c.b16 %v438, %v437
  %v485 = vpack.c.b16 %v440, %v439
  %v486 = vpack.c.b16 %v442, %v441
  %v487 = vpack.c.b16 %v444, %v443
  %v488 = vpack.c.b16 %v446, %v445
  %v489 = vpack.c.b16 %v448, %v447
  %v490 = vpack.c.b16 %v450, %v449
  %v491 = vpack.c.b16 %v452, %v451
  %v492 = vpack.c.b16 %v454, %v453
  %v493 = vpack.c.b16 %v456, %v455
  %v494 = vpack.c.b16 %v458, %v457
  %v495 = vpack.c.b16 %v460, %v459
  %v496 = vpack.c.b16 %v462, %v461
  %v497 = vpack.c.b16 %v464, %v463
  %v498 = vpack.c.b16 %v466, %v465
  %531 = vmatprep.subr.bf16.mxu0 0
  %532 = vmatpush1.bf16.msra.mxu0 %v467
  %533 = vmatprep.subr.bf16.mxu0 0
  %534 = vmatpush1.bf16.msra.mxu0 %v468
  %535 = vmatprep.subr.bf16.mxu0 0
  %536 = vmatpush1.bf16.msra.mxu0 %v469
  %537 = vmatprep.subr.bf16.mxu0 0
  %538 = vmatpush1.bf16.msra.mxu0 %v470
  %539 = vmatprep.subr.bf16.mxu0 0
  %540 = vmatpush1.bf16.msra.mxu0 %v471
  %541 = vmatprep.subr.bf16.mxu0 0
  %542 = vmatpush1.bf16.msra.mxu0 %v472
  %543 = vmatprep.subr.bf16.mxu0 0
  %544 = vmatpush1.bf16.msra.mxu0 %v473
  %545 = vmatprep.subr.bf16.mxu0 0
  %546 = vmatpush1.bf16.msra.mxu0 %v474
  %547 = vmatprep.subr.bf16.mxu0 0
  %548 = vmatpush1.bf16.msra.mxu0 %v475
  %549 = vmatprep.subr.bf16.mxu0 0
  %550 = vmatpush1.bf16.msra.mxu0 %v476
  %551 = vmatprep.subr.bf16.mxu0 0
  %552 = vmatpush1.bf16.msra.mxu0 %v477
  %553 = vmatprep.subr.bf16.mxu0 0
  %554 = vmatpush1.bf16.msra.mxu0 %v478
  %555 = vmatprep.subr.bf16.mxu0 0
  %556 = vmatpush1.bf16.msra.mxu0 %v479
  %557 = vmatprep.subr.bf16.mxu0 0
  %558 = vmatpush1.bf16.msra.mxu0 %v480
  %559 = vmatprep.subr.bf16.mxu0 0
  %560 = vmatpush1.bf16.msra.mxu0 %v481
  %561 = vmatprep.subr.bf16.mxu0 0
  %562 = vmatpush1.bf16.msra.mxu0 %v482
  %563 = vmatprep.mubr.bf16.mxu0 %v253
  %564 = vmatmul.mubr.bf16.gmra.mrb[0].mxu0 %v252
  %v565 = vpop.f32.mrb[0].mxu0
  %v566 = vadd.f32 %v337, %v565
  %v567 = vpop.f32.mrb[0].mxu0
  %v568 = vpop.f32.mrb[0].mxu0
  %v569 = vadd.f32 %v337, %v568
  %v570 = vpop.f32.mrb[0].mxu0
  %571 = vmatprep.mubr.bf16.mxu0 %v257
  %572 = vmatmul.mubr.bf16.gmra.mrb[0].mxu0 %v256
  %v573 = vpop.f32.mrb[0].mxu0
  %v574 = vadd.f32 %v337, %v573
  %v575 = vpop.f32.mrb[0].mxu0
  %v576 = vpop.f32.mrb[0].mxu0
  %v577 = vadd.f32 %v337, %v576
  %v578 = vpop.f32.mrb[0].mxu0
  %579 = vmatprep.mubr.bf16.mxu0 %v261
  %580 = vmatmul.mubr.bf16.gmra.mrb[0].mxu0 %v260
  %v581 = vpop.f32.mrb[0].mxu0
  %v582 = vadd.f32 %v337, %v581
  %v583 = vpop.f32.mrb[0].mxu0
  %v584 = vpop.f32.mrb[0].mxu0
  %v585 = vadd.f32 %v337, %v584
  %v586 = vpop.f32.mrb[0].mxu0
  %587 = vmatprep.mubr.bf16.mxu0 %v265
  %588 = vmatmul.mubr.bf16.gmra.mrb[0].mxu0 %v264
  %v589 = vpop.f32.mrb[0].mxu0
  %v590 = vadd.f32 %v337, %v589
  %v591 = vpop.f32.mrb[0].mxu0
  %v592 = vpop.f32.mrb[0].mxu0
  %v593 = vadd.f32 %v337, %v592
  %v594 = vpop.f32.mrb[0].mxu0
  %595 = vdwg.mxu0
  %596 = vmatprep.subr.bf16.mxu0 0
  %597 = vmatpush1.bf16.msra.mxu0 %v483
  %598 = vmatprep.subr.bf16.mxu0 0
  %599 = vmatpush1.bf16.msra.mxu0 %v484
  %600 = vmatprep.subr.bf16.mxu0 0
  %601 = vmatpush1.bf16.msra.mxu0 %v485
  %602 = vmatprep.subr.bf16.mxu0 0
  %603 = vmatpush1.bf16.msra.mxu0 %v486
  %604 = vmatprep.subr.bf16.mxu0 0
  %605 = vmatpush1.bf16.msra.mxu0 %v487
  %606 = vmatprep.subr.bf16.mxu0 0
  %607 = vmatpush1.bf16.msra.mxu0 %v488
  %608 = vmatprep.subr.bf16.mxu0 0
  %609 = vmatpush1.bf16.msra.mxu0 %v489
  %610 = vmatprep.subr.bf16.mxu0 0
  %611 = vmatpush1.bf16.msra.mxu0 %v490
  %612 = vmatprep.subr.bf16.mxu0 0
  %613 = vmatpush1.bf16.msra.mxu0 %v491
  %614 = vmatprep.subr.bf16.mxu0 0
  %615 = vmatpush1.bf16.msra.mxu0 %v492
  %616 = vmatprep.subr.bf16.mxu0 0
  %617 = vmatpush1.bf16.msra.mxu0 %v493
  %618 = vmatprep.subr.bf16.mxu0 0
  %619 = vmatpush1.bf16.msra.mxu0 %v494
  %620 = vmatprep.subr.bf16.mxu0 0
  %621 = vmatpush1.bf16.msra.mxu0 %v495
  %622 = vmatprep.subr.bf16.mxu0 0
  %623 = vmatpush1.bf16.msra.mxu0 %v496
  %624 = vmatprep.subr.bf16.mxu0 0
  %625 = vmatpush1.bf16.msra.mxu0 %v497
  %626 = vmatprep.subr.bf16.mxu0 0
  %627 = vmatpush1.bf16.msra.mxu0 %v498
  %628 = vmatprep.mubr.bf16.mxu0 %v255
  %629 = vmatmul.mubr.bf16.gmra.mrb[0].mxu0 %v254
  %v630 = vpop.f32.mrb[0].mxu0
  %v631 = vadd.f32 %v566, %v630
  %v632 = vpop.f32.mrb[0].mxu0
  %v633 = vpop.f32.mrb[0].mxu0
  %v634 = vadd.f32 %v569, %v633
  %v635 = vpop.f32.mrb[0].mxu0
  %636 = vmatprep.mubr.bf16.mxu0 %v259
  %637 = vmatmul.mubr.bf16.gmra.mrb[0].mxu0 %v258
  %v638 = vpop.f32.mrb[0].mxu0
  %v639 = vadd.f32 %v574, %v638
  %v640 = vpop.f32.mrb[0].mxu0
  %v641 = vpop.f32.mrb[0].mxu0
  %v642 = vadd.f32 %v577, %v641
  %v643 = vpop.f32.mrb[0].mxu0
  %644 = vmatprep.mubr.bf16.mxu0 %v263
  %645 = vmatmul.mubr.bf16.gmra.mrb[0].mxu0 %v262
  %v646 = vpop.f32.mrb[0].mxu0
  %v647 = vadd.f32 %v582, %v646
  %v648 = vpop.f32.mrb[0].mxu0
  %v649 = vpop.f32.mrb[0].mxu0
  %v650 = vadd.f32 %v585, %v649
  %v651 = vpop.f32.mrb[0].mxu0
  %652 = vmatprep.mubr.bf16.mxu0 %v267
  %653 = vmatmul.mubr.bf16.gmra.mrb[0].mxu0 %v266
  %v654 = vpop.f32.mrb[0].mxu0
  %v655 = vadd.f32 %v590, %v654
  %v656 = vpop.f32.mrb[0].mxu0
  %v657 = vpop.f32.mrb[0].mxu0
  %v658 = vadd.f32 %v593, %v657
  %v659 = vpop.f32.mrb[0].mxu0
  %660 = vdwg.mxu0
  %661 = vst [vmem:[#allocation4] sm:$0xff] %v631
  %662 = vst [vmem:[#allocation4 + $0x8] sm:$0xff] %v634
  %663 = vst [vmem:[#allocation4 + $0x10] sm:$0xff] %v639
  %664 = vst [vmem:[#allocation4 + $0x18] sm:$0xff] %v642
  %665 = vst [vmem:[#allocation4 + $0x20] sm:$0xff] %v647
  %666 = vst [vmem:[#allocation4 + $0x28] sm:$0xff] %v650
  %667 = vst [vmem:[#allocation4 + $0x30] sm:$0xff] %v655
  %668 = vst [vmem:[#allocation4 + $0x38] sm:$0xff] %v658
  %v669 = vadd.f32 %v220, %v224
  %v670 = vadd.f32 %v669, %v228
  %v671 = vadd.f32 %v670, %v232
  %v672 = vadd.f32 %v671, %v236
  %v673 = vadd.f32 %v672, %v240
  %v674 = vadd.f32 %v673, %v244
  %v675 = vadd.f32 %v674, %v248
  %v676 = vadd.f32 %v221, %v225
  %v677 = vadd.f32 %v676, %v229
  %v678 = vadd.f32 %v677, %v233
  %v679 = vadd.f32 %v678, %v237
  %v680 = vadd.f32 %v679, %v241
  %v681 = vadd.f32 %v680, %v245
  %v682 = vadd.f32 %v681, %v249
  %v683 = vadd.f32 %v222, %v226
  %v684 = vadd.f32 %v683, %v230
  %v685 = vadd.f32 %v684, %v234
  %v686 = vadd.f32 %v685, %v238
  %v687 = vadd.f32 %v686, %v242
  %v688 = vadd.f32 %v687, %v246
  %v689 = vadd.f32 %v688, %v250
  %v690 = vadd.f32 %v223, %v227
  %v691 = vadd.f32 %v690, %v231
  %v692 = vadd.f32 %v691, %v235
  %v693 = vadd.f32 %v692, %v239
  %v694 = vadd.f32 %v693, %v243
  %v695 = vadd.f32 %v694, %v247
  %v696 = vadd.f32 %v695, %v251
  %v697 = vld [vmem:[%s2] sm:$0xff]
  %v698 = vld [vmem:[%s2 + $0x8] sm:$0xff]
  %v699 = vld [vmem:[%s2 + $0x10] sm:$0xff]
  %v700 = vld [vmem:[%s2 + $0x18] sm:$0xff]
  %v701 = vld [vmem:[%s2 + $0x20] sm:$0xff]
  %v702 = vld [vmem:[%s2 + $0x28] sm:$0xff]
  %v703 = vld [vmem:[%s2 + $0x30] sm:$0xff]
  %v704 = vld [vmem:[%s2 + $0x38] sm:$0xff]
  %v705 = vld [vmem:[%s2 + $0x40] sm:$0xff]
  %v706 = vld [vmem:[%s2 + $0x48] sm:$0xff]
  %v707 = vld [vmem:[%s2 + $0x50] sm:$0xff]
  %v708 = vld [vmem:[%s2 + $0x58] sm:$0xff]
  %v709 = vld [vmem:[%s2 + $0x60] sm:$0xff]
  %v710 = vld [vmem:[%s2 + $0x68] sm:$0xff]
  %v711 = vld [vmem:[%s2 + $0x70] sm:$0xff]
  %v712 = vld [vmem:[%s2 + $0x78] sm:$0xff]
  %v713 = vld [vmem:[%s2 + $0x80] sm:$0xff]
  %v714 = vld [vmem:[%s2 + $0x88] sm:$0xff]
  %v715 = vld [vmem:[%s2 + $0x90] sm:$0xff]
  %v716 = vld [vmem:[%s2 + $0x98] sm:$0xff]
  %v717 = vld [vmem:[%s2 + $0xa0] sm:$0xff]
  %v718 = vld [vmem:[%s2 + $0xa8] sm:$0xff]
  %v719 = vld [vmem:[%s2 + $0xb0] sm:$0xff]
  %v720 = vld [vmem:[%s2 + $0xb8] sm:$0xff]
  %v721 = vld [vmem:[%s2 + $0xc0] sm:$0xff]
  %v722 = vld [vmem:[%s2 + $0xc8] sm:$0xff]
  %v723 = vld [vmem:[%s2 + $0xd0] sm:$0xff]
  %v724 = vld [vmem:[%s2 + $0xd8] sm:$0xff]
  %v725 = vld [vmem:[%s2 + $0xe0] sm:$0xff]
  %v726 = vld [vmem:[%s2 + $0xe8] sm:$0xff]
  %v727 = vld [vmem:[%s2 + $0xf0] sm:$0xff]
  %v728 = vld [vmem:[%s2 + $0xf8] sm:$0xff]
  %v729 = vld [vmem:[%s2 + $0x100] sm:$0xff]
  %v730 = vld [vmem:[%s2 + $0x108] sm:$0xff]
  %v731 = vld [vmem:[%s2 + $0x110] sm:$0xff]
  %v732 = vld [vmem:[%s2 + $0x118] sm:$0xff]
  %v733 = vld [vmem:[%s2 + $0x120] sm:$0xff]
  %v734 = vld [vmem:[%s2 + $0x128] sm:$0xff]
  %v735 = vld [vmem:[%s2 + $0x130] sm:$0xff]
  %v736 = vld [vmem:[%s2 + $0x138] sm:$0xff]
  %v737 = vld [vmem:[%s2 + $0x140] sm:$0xff]
  %v738 = vld [vmem:[%s2 + $0x148] sm:$0xff]
  %v739 = vld [vmem:[%s2 + $0x150] sm:$0xff]
  %v740 = vld [vmem:[%s2 + $0x158] sm:$0xff]
  %v741 = vld [vmem:[%s2 + $0x160] sm:$0xff]
  %v742 = vld [vmem:[%s2 + $0x168] sm:$0xff]
  %v743 = vld [vmem:[%s2 + $0x170] sm:$0xff]
  %v744 = vld [vmem:[%s2 + $0x178] sm:$0xff]
  %v745 = vld [vmem:[%s2 + $0x180] sm:$0xff]
  %v746 = vld [vmem:[%s2 + $0x188] sm:$0xff]
  %v747 = vld [vmem:[%s2 + $0x190] sm:$0xff]
  %v748 = vld [vmem:[%s2 + $0x198] sm:$0xff]
  %v749 = vld [vmem:[%s2 + $0x1a0] sm:$0xff]
  %v750 = vld [vmem:[%s2 + $0x1a8] sm:$0xff]
  %v751 = vld [vmem:[%s2 + $0x1b0] sm:$0xff]
  %v752 = vld [vmem:[%s2 + $0x1b8] sm:$0xff]
  %v753 = vld [vmem:[%s2 + $0x1c0] sm:$0xff]
  %v754 = vld [vmem:[%s2 + $0x1c8] sm:$0xff]
  %v755 = vld [vmem:[%s2 + $0x1d0] sm:$0xff]
  %v756 = vld [vmem:[%s2 + $0x1d8] sm:$0xff]
  %v757 = vld [vmem:[%s2 + $0x1e0] sm:$0xff]
  %v758 = vld [vmem:[%s2 + $0x1e8] sm:$0xff]
  %v759 = vld [vmem:[%s2 + $0x1f0] sm:$0xff]
  %v760 = vld [vmem:[%s2 + $0x1f8] sm:$0xff]
  %761 = vmatprep.subr.mxu0 0.0
  %762 = vmatpush1.msra.mxu0 %v697
  %763 = vmatprep.subr.mxu0 0.0
  %764 = vmatpush1.msra.mxu0 %v698
  %765 = vmatprep.subr.mxu0 0.0
  %766 = vmatpush1.msra.mxu0 %v699
  %767 = vmatprep.subr.mxu0 0.0
  %768 = vmatpush1.msra.mxu0 %v700
  %769 = vmatprep.subr.mxu0 0.0
  %770 = vmatpush1.msra.mxu0 %v701
  %771 = vmatprep.subr.mxu0 0.0
  %772 = vmatpush1.msra.mxu0 %v702
  %773 = vmatprep.subr.mxu0 0.0
  %774 = vmatpush1.msra.mxu0 %v703
  %775 = vmatprep.subr.mxu0 0.0
  %776 = vmatpush1.msra.mxu0 %v704
  %777 = vmatprep.subr.mxu0 0.0
  %778 = vmatpush1.msra.mxu0 %v705
  %779 = vmatprep.subr.mxu0 0.0
  %780 = vmatpush1.msra.mxu0 %v706
  %781 = vmatprep.subr.mxu0 0.0
  %782 = vmatpush1.msra.mxu0 %v707
  %783 = vmatprep.subr.mxu0 0.0
  %784 = vmatpush1.msra.mxu0 %v708
  %785 = vmatprep.subr.mxu0 0.0
  %786 = vmatpush1.msra.mxu0 %v709
  %787 = vmatprep.subr.mxu0 0.0
  %788 = vmatpush1.msra.mxu0 %v710
  %789 = vmatprep.subr.mxu0 0.0
  %790 = vmatpush1.msra.mxu0 %v711
  %791 = vmatprep.subr.mxu0 0.0
  %792 = vmatpush1.msra.mxu0 %v712
  %793 = vmatprep.subr.mxu0 0.0
  %794 = vmatpush1.msra.mxu0 %v713
  %795 = vmatprep.subr.mxu0 0.0
  %796 = vmatpush1.msra.mxu0 %v714
  %797 = vmatprep.subr.mxu0 0.0
  %798 = vmatpush1.msra.mxu0 %v715
  %799 = vmatprep.subr.mxu0 0.0
  %800 = vmatpush1.msra.mxu0 %v716
  %801 = vmatprep.subr.mxu0 0.0
  %802 = vmatpush1.msra.mxu0 %v717
  %803 = vmatprep.subr.mxu0 0.0
  %804 = vmatpush1.msra.mxu0 %v718
  %805 = vmatprep.subr.mxu0 0.0
  %806 = vmatpush1.msra.mxu0 %v719
  %807 = vmatprep.subr.mxu0 0.0
  %808 = vmatpush1.msra.mxu0 %v720
  %809 = vmatprep.subr.mxu0 0.0
  %810 = vmatpush1.msra.mxu0 %v721
  %811 = vmatprep.subr.mxu0 0.0
  %812 = vmatpush1.msra.mxu0 %v722
  %813 = vmatprep.subr.mxu0 0.0
  %814 = vmatpush1.msra.mxu0 %v723
  %815 = vmatprep.subr.mxu0 0.0
  %816 = vmatpush1.msra.mxu0 %v724
  %817 = vmatprep.subr.mxu0 0.0
  %818 = vmatpush1.msra.mxu0 %v725
  %819 = vmatprep.subr.mxu0 0.0
  %820 = vmatpush1.msra.mxu0 %v726
  %821 = vmatprep.subr.mxu0 0.0
  %822 = vmatpush1.msra.mxu0 %v727
  %823 = vmatprep.subr.mxu0 0.0
  %824 = vmatpush1.msra.mxu0 %v728
  %825 = vmatprep.mubr.f32.mxu0 %v682
  %826 = vmatmul.mubr.f32.gmra.mrb[0].mxu0 %v675
  %v827 = vpop.f32.mrb[0].mxu0
  %v828 = vadd.f32 0.0, %v827
  %v829 = vpop.f32.mrb[0].mxu0
  %830 = vdwg.mxu0
  %831 = vmatprep.subr.mxu0 0.0
  %832 = vmatpush1.msra.mxu0 %v729
  %833 = vmatprep.subr.mxu0 0.0
  %834 = vmatpush1.msra.mxu0 %v730
  %835 = vmatprep.subr.mxu0 0.0
  %836 = vmatpush1.msra.mxu0 %v731
  %837 = vmatprep.subr.mxu0 0.0
  %838 = vmatpush1.msra.mxu0 %v732
  %839 = vmatprep.subr.mxu0 0.0
  %840 = vmatpush1.msra.mxu0 %v733
  %841 = vmatprep.subr.mxu0 0.0
  %842 = vmatpush1.msra.mxu0 %v734
  %843 = vmatprep.subr.mxu0 0.0
  %844 = vmatpush1.msra.mxu0 %v735
  %845 = vmatprep.subr.mxu0 0.0
  %846 = vmatpush1.msra.mxu0 %v736
  %847 = vmatprep.subr.mxu0 0.0
  %848 = vmatpush1.msra.mxu0 %v737
  %849 = vmatprep.subr.mxu0 0.0
  %850 = vmatpush1.msra.mxu0 %v738
  %851 = vmatprep.subr.mxu0 0.0
  %852 = vmatpush1.msra.mxu0 %v739
  %853 = vmatprep.subr.mxu0 0.0
  %854 = vmatpush1.msra.mxu0 %v740
  %855 = vmatprep.subr.mxu0 0.0
  %856 = vmatpush1.msra.mxu0 %v741
  %857 = vmatprep.subr.mxu0 0.0
  %858 = vmatpush1.msra.mxu0 %v742
  %859 = vmatprep.subr.mxu0 0.0
  %860 = vmatpush1.msra.mxu0 %v743
  %861 = vmatprep.subr.mxu0 0.0
  %862 = vmatpush1.msra.mxu0 %v744
  %863 = vmatprep.subr.mxu0 0.0
  %864 = vmatpush1.msra.mxu0 %v745
  %865 = vmatprep.subr.mxu0 0.0
  %866 = vmatpush1.msra.mxu0 %v746
  %867 = vmatprep.subr.mxu0 0.0
  %868 = vmatpush1.msra.mxu0 %v747
  %869 = vmatprep.subr.mxu0 0.0
  %870 = vmatpush1.msra.mxu0 %v748
  %871 = vmatprep.subr.mxu0 0.0
  %872 = vmatpush1.msra.mxu0 %v749
  %873 = vmatprep.subr.mxu0 0.0
  %874 = vmatpush1.msra.mxu0 %v750
  %875 = vmatprep.subr.mxu0 0.0
  %876 = vmatpush1.msra.mxu0 %v751
  %877 = vmatprep.subr.mxu0 0.0
  %878 = vmatpush1.msra.mxu0 %v752
  %879 = vmatprep.subr.mxu0 0.0
  %880 = vmatpush1.msra.mxu0 %v753
  %881 = vmatprep.subr.mxu0 0.0
  %882 = vmatpush1.msra.mxu0 %v754
  %883 = vmatprep.subr.mxu0 0.0
  %884 = vmatpush1.msra.mxu0 %v755
  %885 = vmatprep.subr.mxu0 0.0
  %886 = vmatpush1.msra.mxu0 %v756
  %887 = vmatprep.subr.mxu0 0.0
  %888 = vmatpush1.msra.mxu0 %v757
  %889 = vmatprep.subr.mxu0 0.0
  %890 = vmatpush1.msra.mxu0 %v758
  %891 = vmatprep.subr.mxu0 0.0
  %892 = vmatpush1.msra.mxu0 %v759
  %893 = vmatprep.subr.mxu0 0.0
  %894 = vmatpush1.msra.mxu0 %v760
  %895 = vmatprep.mubr.f32.mxu0 %v696
  %896 = vmatmul.mubr.f32.gmra.mrb[0].mxu0 %v689
  %v897 = vpop.f32.mrb[0].mxu0
  %v898 = vadd.f32 %v828, %v897
  %v899 = vpop.f32.mrb[0].mxu0
  %900 = vdwg.mxu0
  %v901 = vld [vmem:[%s4] sm:$0xf]
  %v902 = vld [vmem:[%s4 + $0x4] sm:$0xf]
  %v903 = vld [vmem:[%s4 + $0x8] sm:$0xf]
  %v904 = vld [vmem:[%s4 + $0xc] sm:$0xf]
  %v905 = vld [vmem:[%s4 + $0x10] sm:$0xf]
  %v906 = vld [vmem:[%s4 + $0x14] sm:$0xf]
  %v907 = vld [vmem:[%s4 + $0x18] sm:$0xf]
  %v908 = vld [vmem:[%s4 + $0x1c] sm:$0xf]
  %v909 = vld [vmem:[%s4 + $0x20] sm:$0xf]
  %v910 = vld [vmem:[%s4 + $0x24] sm:$0xf]
  %v911 = vld [vmem:[%s4 + $0x28] sm:$0xf]
  %v912 = vld [vmem:[%s4 + $0x2c] sm:$0xf]
  %v913 = vld [vmem:[%s4 + $0x30] sm:$0xf]
  %v914 = vld [vmem:[%s4 + $0x34] sm:$0xf]
  %v915 = vld [vmem:[%s4 + $0x38] sm:$0xf]
  %v916 = vld [vmem:[%s4 + $0x3c] sm:$0xf]
  %v917 = vld [vmem:[#allocation2] sm:$0xff]
  %v918 = vld [vmem:[%s1] sm:$0xff]
  %v919 = vld [vmem:[#allocation4] sm:$0xff]
  %v920 = vpack.c.bf16 %v917, %v917
  %v937 = vunpack.c.l.b16 %v901
  %v938 = vunpack.c.l.b16 %v902
  %v939 = vunpack.c.l.b16 %v903
  %v940 = vunpack.c.l.b16 %v904
  %v941 = vunpack.c.l.b16 %v905
  %v942 = vunpack.c.l.b16 %v906
  %v943 = vunpack.c.l.b16 %v907
  %v944 = vunpack.c.l.b16 %v908
  %v945 = vunpack.c.l.b16 %v909
  %v946 = vunpack.c.l.b16 %v910
  %v947 = vunpack.c.l.b16 %v911
  %v948 = vunpack.c.l.b16 %v912
  %v949 = vunpack.c.l.b16 %v913
  %v950 = vunpack.c.l.b16 %v914
  %v951 = vunpack.c.l.b16 %v915
  %v952 = vunpack.c.l.b16 %v916
  %v953 = vpack.c.b16 %v938, %v937
  %v954 = vpack.c.b16 %v940, %v939
  %v955 = vpack.c.b16 %v942, %v941
  %v956 = vpack.c.b16 %v944, %v943
  %v957 = vpack.c.b16 %v946, %v945
  %v958 = vpack.c.b16 %v948, %v947
  %v959 = vpack.c.b16 %v950, %v949
  %v960 = vpack.c.b16 %v952, %v951
  %969 = vmatprep.subr.bf16.mxu0 0
  %970 = vmatpush1.bf16.msra.mxu0 %v953
  %971 = vmatprep.subr.bf16.mxu0 0
  %972 = vmatpush1.bf16.msra.mxu0 %v954
  %973 = vmatprep.subr.bf16.mxu0 0
  %974 = vmatpush1.bf16.msra.mxu0 %v955
  %975 = vmatprep.subr.bf16.mxu0 0
  %976 = vmatpush1.bf16.msra.mxu0 %v956
  %977 = vmatprep.subr.bf16.mxu0 0
  %978 = vmatpush1.bf16.msra.mxu0 %v957
  %979 = vmatprep.subr.bf16.mxu0 0
  %980 = vmatpush1.bf16.msra.mxu0 %v958
  %981 = vmatprep.subr.bf16.mxu0 0
  %982 = vmatpush1.bf16.msra.mxu0 %v959
  %983 = vmatprep.subr.bf16.mxu0 0
  %984 = vmatpush1.bf16.msra.mxu0 %v960
  %985 = vmatprep.subr.bf16.mxu0 0
  %986 = vmatpush1.bf16.msra.mxu0 0
  %987 = vmatprep.subr.bf16.mxu0 0
  %988 = vmatpush1.bf16.msra.mxu0 0
  %989 = vmatprep.subr.bf16.mxu0 0
  %990 = vmatpush1.bf16.msra.mxu0 0
  %991 = vmatprep.subr.bf16.mxu0 0
  %992 = vmatpush1.bf16.msra.mxu0 0
  %993 = vmatprep.subr.bf16.mxu0 0
  %994 = vmatpush1.bf16.msra.mxu0 0
  %995 = vmatprep.subr.bf16.mxu0 0
  %996 = vmatpush1.bf16.msra.mxu0 0
  %997 = vmatprep.subr.bf16.mxu0 0
  %998 = vmatpush1.bf16.msra.mxu0 0
  %999 = vmatprep.subr.bf16.mxu0 0
  %1000 = vmatpush1.bf16.msra.mxu0 0
  %1001 = vmatprep.mubr.bf16.mxu0 0
  %1002 = vmatmul.mubr.bf16.gmra.mrb[0].mxu0 %v920
  %v1003 = vpop.f32.mrb[0].mxu0
  %v1004 = vadd.f32 0.0, %v1003
  %v1005 = vpop.f32.mrb[0].mxu0
  %v1006 = vpop.f32.mrb[0].mxu0
  %v1007 = vpop.f32.mrb[0].mxu0
  %1008 = vdwg.mxu0
  %v1009 = vadd.f32 %v919, %v1004
  %v1010 = vtanh.pop %v1009
  %v1011 = vsub.f32 %v1010, %v917
  %1013 = vset.pattern.permute.xlu0 0
  %1014 = vperm.xlu0 %1013, %v918
  %v1015 = vpop.permute.xlu0 %1014
  %v1017 = vmul.f32 %v1015, %v1011
  %v1018 = vadd.f32 %v917, %v1017
  %v1019 = vmul.f32 %v1015, %v1018
  %v1020 = vadd.f32 %v1019, 0.0
  %s1021 = scalar_lea.vmem %s1, 8
  %v1022 = vld [vmem:[%s1021] sm:$0xff]
  %s1023 = scalar_lea.vmem [#allocation4], 8
  %v1024 = vld [vmem:[%s1023] sm:$0xff]
  %v1025 = vpack.c.bf16 %v1018, %v1018
  %1026 = vmatprep.subr.bf16.mxu0 0
  %1027 = vmatpush1.bf16.msra.mxu0 %v953
  %1028 = vmatprep.subr.bf16.mxu0 0
  %1029 = vmatpush1.bf16.msra.mxu0 %v954
  %1030 = vmatprep.subr.bf16.mxu0 0
  %1031 = vmatpush1.bf16.msra.mxu0 %v955
  %1032 = vmatprep.subr.bf16.mxu0 0
  %1033 = vmatpush1.bf16.msra.mxu0 %v956
  %1034 = vmatprep.subr.bf16.mxu0 0
  %1035 = vmatpush1.bf16.msra.mxu0 %v957
  %1036 = vmatprep.subr.bf16.mxu0 0
  %1037 = vmatpush1.bf16.msra.mxu0 %v958
  %1038 = vmatprep.subr.bf16.mxu0 0
  %1039 = vmatpush1.bf16.msra.mxu0 %v959
  %1040 = vmatprep.subr.bf16.mxu0 0
  %1041 = vmatpush1.bf16.msra.mxu0 %v960
  %1042 = vmatprep.subr.bf16.mxu0 0
  %1043 = vmatpush1.bf16.msra.mxu0 0
  %1044 = vmatprep.subr.bf16.mxu0 0
  %1045 = vmatpush1.bf16.msra.mxu0 0
  %1046 = vmatprep.subr.bf16.mxu0 0
  %1047 = vmatpush1.bf16.msra.mxu0 0
  %1048 = vmatprep.subr.bf16.mxu0 0
  %1049 = vmatpush1.bf16.msra.mxu0 0
  %1050 = vmatprep.subr.bf16.mxu0 0
  %1051 = vmatpush1.bf16.msra.mxu0 0
  %1052 = vmatprep.subr.bf16.mxu0 0
  %1053 = vmatpush1.bf16.msra.mxu0 0
  %1054 = vmatprep.subr.bf16.mxu0 0
  %1055 = vmatpush1.bf16.msra.mxu0 0
  %1056 = vmatprep.subr.bf16.mxu0 0
  %1057 = vmatpush1.bf16.msra.mxu0 0
  %1058 = vmatprep.mubr.bf16.mxu0 0
  %1059 = vmatmul.mubr.bf16.gmra.mrb[0].mxu0 %v1025
  %v1060 = vpop.f32.mrb[0].mxu0
  %v1061 = vadd.f32 0.0, %v1060
  %v1062 = vpop.f32.mrb[0].mxu0
  %v1063 = vpop.f32.mrb[0].mxu0
  %v1064 = vpop.f32.mrb[0].mxu0
  %1065 = vdwg.mxu0
  %v1066 = vadd.f32 %v1024, %v1061
  %v1067 = vtanh.pop %v1066
  %v1068 = vsub.f32 %v1067, %v1018
  %1070 = vset.pattern.permute.xlu0 0
  %1071 = vperm.xlu0 %1070, %v1022
  %v1072 = vpop.permute.xlu0 %1071
  %v1074 = vmul.f32 %v1072, %v1068
  %v1075 = vadd.f32 %v1018, %v1074
  %v1076 = vmul.f32 %v1072, %v1075
  %v1077 = vadd.f32 %v1020, %v1076
  %s1078 = scalar_lea.vmem %s1, 16
  %v1079 = vld [vmem:[%s1078] sm:$0xff]
  %s1080 = scalar_lea.vmem [#allocation4], 16
  %v1081 = vld [vmem:[%s1080] sm:$0xff]
  %v1082 = vpack.c.bf16 %v1075, %v1075
  %1083 = vmatprep.subr.bf16.mxu0 0
  %1084 = vmatpush1.bf16.msra.mxu0 %v953
  %1085 = vmatprep.subr.bf16.mxu0 0
  %1086 = vmatpush1.bf16.msra.mxu0 %v954
  %1087 = vmatprep.subr.bf16.mxu0 0
  %1088 = vmatpush1.bf16.msra.mxu0 %v955
  %1089 = vmatprep.subr.bf16.mxu0 0
  %1090 = vmatpush1.bf16.msra.mxu0 %v956
  %1091 = vmatprep.subr.bf16.mxu0 0
  %1092 = vmatpush1.bf16.msra.mxu0 %v957
  %1093 = vmatprep.subr.bf16.mxu0 0
  %1094 = vmatpush1.bf16.msra.mxu0 %v958
  %1095 = vmatprep.subr.bf16.mxu0 0
  %1096 = vmatpush1.bf16.msra.mxu0 %v959
  %1097 = vmatprep.subr.bf16.mxu0 0
  %1098 = vmatpush1.bf16.msra.mxu0 %v960
  %1099 = vmatprep.subr.bf16.mxu0 0
  %1100 = vmatpush1.bf16.msra.mxu0 0
  %1101 = vmatprep.subr.bf16.mxu0 0
  %1102 = vmatpush1.bf16.msra.mxu0 0
  %1103 = vmatprep.subr.bf16.mxu0 0
  %1104 = vmatpush1.bf16.msra.mxu0 0
  %1105 = vmatprep.subr.bf16.mxu0 0
  %1106 = vmatpush1.bf16.msra.mxu0 0
  %1107 = vmatprep.subr.bf16.mxu0 0
  %1108 = vmatpush1.bf16.msra.mxu0 0
  %1109 = vmatprep.subr.bf16.mxu0 0
  %1110 = vmatpush1.bf16.msra.mxu0 0
  %1111 = vmatprep.subr.bf16.mxu0 0
  %1112 = vmatpush1.bf16.msra.mxu0 0
  %1113 = vmatprep.subr.bf16.mxu0 0
  %1114 = vmatpush1.bf16.msra.mxu0 0
  %1115 = vmatprep.mubr.bf16.mxu0 0
  %1116 = vmatmul.mubr.bf16.gmra.mrb[0].mxu0 %v1082
  %v1117 = vpop.f32.mrb[0].mxu0
  %v1118 = vadd.f32 0.0, %v1117
  %v1119 = vpop.f32.mrb[0].mxu0
  %v1120 = vpop.f32.mrb[0].mxu0
  %v1121 = vpop.f32.mrb[0].mxu0
  %1122 = vdwg.mxu0
  %v1123 = vadd.f32 %v1081, %v1118
  %v1124 = vtanh.pop %v1123
  %v1125 = vsub.f32 %v1124, %v1075
  %1127 = vset.pattern.permute.xlu0 0
  %1128 = vperm.xlu0 %1127, %v1079
  %v1129 = vpop.permute.xlu0 %1128
  %v1131 = vmul.f32 %v1129, %v1125
  %v1132 = vadd.f32 %v1075, %v1131
  %v1133 = vmul.f32 %v1129, %v1132
  %v1134 = vadd.f32 %v1077, %v1133
  %s1135 = scalar_lea.vmem %s1, 24
  %v1136 = vld [vmem:[%s1135] sm:$0xff]
  %s1137 = scalar_lea.vmem [#allocation4], 24
  %v1138 = vld [vmem:[%s1137] sm:$0xff]
  %v1139 = vpack.c.bf16 %v1132, %v1132
  %1140 = vmatprep.subr.bf16.mxu0 0
  %1141 = vmatpush1.bf16.msra.mxu0 %v953
  %1142 = vmatprep.subr.bf16.mxu0 0
  %1143 = vmatpush1.bf16.msra.mxu0 %v954
  %1144 = vmatprep.subr.bf16.mxu0 0
  %1145 = vmatpush1.bf16.msra.mxu0 %v955
  %1146 = vmatprep.subr.bf16.mxu0 0
  %1147 = vmatpush1.bf16.msra.mxu0 %v956
  %1148 = vmatprep.subr.bf16.mxu0 0
  %1149 = vmatpush1.bf16.msra.mxu0 %v957
  %1150 = vmatprep.subr.bf16.mxu0 0
  %1151 = vmatpush1.bf16.msra.mxu0 %v958
  %1152 = vmatprep.subr.bf16.mxu0 0
  %1153 = vmatpush1.bf16.msra.mxu0 %v959
  %1154 = vmatprep.subr.bf16.mxu0 0
  %1155 = vmatpush1.bf16.msra.mxu0 %v960
  %1156 = vmatprep.subr.bf16.mxu0 0
  %1157 = vmatpush1.bf16.msra.mxu0 0
  %1158 = vmatprep.subr.bf16.mxu0 0
  %1159 = vmatpush1.bf16.msra.mxu0 0
  %1160 = vmatprep.subr.bf16.mxu0 0
  %1161 = vmatpush1.bf16.msra.mxu0 0
  %1162 = vmatprep.subr.bf16.mxu0 0
  %1163 = vmatpush1.bf16.msra.mxu0 0
  %1164 = vmatprep.subr.bf16.mxu0 0
  %1165 = vmatpush1.bf16.msra.mxu0 0
  %1166 = vmatprep.subr.bf16.mxu0 0
  %1167 = vmatpush1.bf16.msra.mxu0 0
  %1168 = vmatprep.subr.bf16.mxu0 0
  %1169 = vmatpush1.bf16.msra.mxu0 0
  %1170 = vmatprep.subr.bf16.mxu0 0
  %1171 = vmatpush1.bf16.msra.mxu0 0
  %1172 = vmatprep.mubr.bf16.mxu0 0
  %1173 = vmatmul.mubr.bf16.gmra.mrb[0].mxu0 %v1139
  %v1174 = vpop.f32.mrb[0].mxu0
  %v1175 = vadd.f32 0.0, %v1174
  %v1176 = vpop.f32.mrb[0].mxu0
  %v1177 = vpop.f32.mrb[0].mxu0
  %v1178 = vpop.f32.mrb[0].mxu0
  %1179 = vdwg.mxu0
  %v1180 = vadd.f32 %v1138, %v1175
  %v1181 = vtanh.pop %v1180
  %v1182 = vsub.f32 %v1181, %v1132
  %1184 = vset.pattern.permute.xlu0 0
  %1185 = vperm.xlu0 %1184, %v1136
  %v1186 = vpop.permute.xlu0 %1185
  %v1188 = vmul.f32 %v1186, %v1182
  %v1189 = vadd.f32 %v1132, %v1188
  %v1190 = vmul.f32 %v1186, %v1189
  %v1191 = vadd.f32 %v1134, %v1190
  %s1192 = scalar_lea.vmem %s1, 32
  %v1193 = vld [vmem:[%s1192] sm:$0xff]
  %s1194 = scalar_lea.vmem [#allocation4], 32
  %v1195 = vld [vmem:[%s1194] sm:$0xff]
  %v1196 = vpack.c.bf16 %v1189, %v1189
  %1197 = vmatprep.subr.bf16.mxu0 0
  %1198 = vmatpush1.bf16.msra.mxu0 %v953
  %1199 = vmatprep.subr.bf16.mxu0 0
  %1200 = vmatpush1.bf16.msra.mxu0 %v954
  %1201 = vmatprep.subr.bf16.mxu0 0
  %1202 = vmatpush1.bf16.msra.mxu0 %v955
  %1203 = vmatprep.subr.bf16.mxu0 0
  %1204 = vmatpush1.bf16.msra.mxu0 %v956
  %1205 = vmatprep.subr.bf16.mxu0 0
  %1206 = vmatpush1.bf16.msra.mxu0 %v957
  %1207 = vmatprep.subr.bf16.mxu0 0
  %1208 = vmatpush1.bf16.msra.mxu0 %v958
  %1209 = vmatprep.subr.bf16.mxu0 0
  %1210 = vmatpush1.bf16.msra.mxu0 %v959
  %1211 = vmatprep.subr.bf16.mxu0 0
  %1212 = vmatpush1.bf16.msra.mxu0 %v960
  %1213 = vmatprep.subr.bf16.mxu0 0
  %1214 = vmatpush1.bf16.msra.mxu0 0
  %1215 = vmatprep.subr.bf16.mxu0 0
  %1216 = vmatpush1.bf16.msra.mxu0 0
  %1217 = vmatprep.subr.bf16.mxu0 0
  %1218 = vmatpush1.bf16.msra.mxu0 0
  %1219 = vmatprep.subr.bf16.mxu0 0
  %1220 = vmatpush1.bf16.msra.mxu0 0
  %1221 = vmatprep.subr.bf16.mxu0 0
  %1222 = vmatpush1.bf16.msra.mxu0 0
  %1223 = vmatprep.subr.bf16.mxu0 0
  %1224 = vmatpush1.bf16.msra.mxu0 0
  %1225 = vmatprep.subr.bf16.mxu0 0
  %1226 = vmatpush1.bf16.msra.mxu0 0
  %1227 = vmatprep.subr.bf16.mxu0 0
  %1228 = vmatpush1.bf16.msra.mxu0 0
  %1229 = vmatprep.mubr.bf16.mxu0 0
  %1230 = vmatmul.mubr.bf16.gmra.mrb[0].mxu0 %v1196
  %v1231 = vpop.f32.mrb[0].mxu0
  %v1232 = vadd.f32 0.0, %v1231
  %v1233 = vpop.f32.mrb[0].mxu0
  %v1234 = vpop.f32.mrb[0].mxu0
  %v1235 = vpop.f32.mrb[0].mxu0
  %1236 = vdwg.mxu0
  %v1237 = vadd.f32 %v1195, %v1232
  %v1238 = vtanh.pop %v1237
  %v1239 = vsub.f32 %v1238, %v1189
  %1241 = vset.pattern.permute.xlu0 0
  %1242 = vperm.xlu0 %1241, %v1193
  %v1243 = vpop.permute.xlu0 %1242
  %v1245 = vmul.f32 %v1243, %v1239
  %v1246 = vadd.f32 %v1189, %v1245
  %v1247 = vmul.f32 %v1243, %v1246
  %v1248 = vadd.f32 %v1191, %v1247
  %s1249 = scalar_lea.vmem %s1, 40
  %v1250 = vld [vmem:[%s1249] sm:$0xff]
  %s1251 = scalar_lea.vmem [#allocation4], 40
  %v1252 = vld [vmem:[%s1251] sm:$0xff]
  %v1253 = vpack.c.bf16 %v1246, %v1246
  %1254 = vmatprep.subr.bf16.mxu0 0
  %1255 = vmatpush1.bf16.msra.mxu0 %v953
  %1256 = vmatprep.subr.bf16.mxu0 0
  %1257 = vmatpush1.bf16.msra.mxu0 %v954
  %1258 = vmatprep.subr.bf16.mxu0 0
  %1259 = vmatpush1.bf16.msra.mxu0 %v955
  %1260 = vmatprep.subr.bf16.mxu0 0
  %1261 = vmatpush1.bf16.msra.mxu0 %v956
  %1262 = vmatprep.subr.bf16.mxu0 0
  %1263 = vmatpush1.bf16.msra.mxu0 %v957
  %1264 = vmatprep.subr.bf16.mxu0 0
  %1265 = vmatpush1.bf16.msra.mxu0 %v958
  %1266 = vmatprep.subr.bf16.mxu0 0
  %1267 = vmatpush1.bf16.msra.mxu0 %v959
  %1268 = vmatprep.subr.bf16.mxu0 0
  %1269 = vmatpush1.bf16.msra.mxu0 %v960
  %1270 = vmatprep.subr.bf16.mxu0 0
  %1271 = vmatpush1.bf16.msra.mxu0 0
  %1272 = vmatprep.subr.bf16.mxu0 0
  %1273 = vmatpush1.bf16.msra.mxu0 0
  %1274 = vmatprep.subr.bf16.mxu0 0
  %1275 = vmatpush1.bf16.msra.mxu0 0
  %1276 = vmatprep.subr.bf16.mxu0 0
  %1277 = vmatpush1.bf16.msra.mxu0 0
  %1278 = vmatprep.subr.bf16.mxu0 0
  %1279 = vmatpush1.bf16.msra.mxu0 0
  %1280 = vmatprep.subr.bf16.mxu0 0
  %1281 = vmatpush1.bf16.msra.mxu0 0
  %1282 = vmatprep.subr.bf16.mxu0 0
  %1283 = vmatpush1.bf16.msra.mxu0 0
  %1284 = vmatprep.subr.bf16.mxu0 0
  %1285 = vmatpush1.bf16.msra.mxu0 0
  %1286 = vmatprep.mubr.bf16.mxu0 0
  %1287 = vmatmul.mubr.bf16.gmra.mrb[0].mxu0 %v1253
  %v1288 = vpop.f32.mrb[0].mxu0
  %v1289 = vadd.f32 0.0, %v1288
  %v1290 = vpop.f32.mrb[0].mxu0
  %v1291 = vpop.f32.mrb[0].mxu0
  %v1292 = vpop.f32.mrb[0].mxu0
  %1293 = vdwg.mxu0
  %v1294 = vadd.f32 %v1252, %v1289
  %v1295 = vtanh.pop %v1294
  %v1296 = vsub.f32 %v1295, %v1246
  %1298 = vset.pattern.permute.xlu0 0
  %1299 = vperm.xlu0 %1298, %v1250
  %v1300 = vpop.permute.xlu0 %1299
  %v1302 = vmul.f32 %v1300, %v1296
  %v1303 = vadd.f32 %v1246, %v1302
  %v1304 = vmul.f32 %v1300, %v1303
  %v1305 = vadd.f32 %v1248, %v1304
  %s1306 = scalar_lea.vmem %s1, 48
  %v1307 = vld [vmem:[%s1306] sm:$0xff]
  %s1308 = scalar_lea.vmem [#allocation4], 48
  %v1309 = vld [vmem:[%s1308] sm:$0xff]
  %v1310 = vpack.c.bf16 %v1303, %v1303
  %1311 = vmatprep.subr.bf16.mxu0 0
  %1312 = vmatpush1.bf16.msra.mxu0 %v953
  %1313 = vmatprep.subr.bf16.mxu0 0
  %1314 = vmatpush1.bf16.msra.mxu0 %v954
  %1315 = vmatprep.subr.bf16.mxu0 0
  %1316 = vmatpush1.bf16.msra.mxu0 %v955
  %1317 = vmatprep.subr.bf16.mxu0 0
  %1318 = vmatpush1.bf16.msra.mxu0 %v956
  %1319 = vmatprep.subr.bf16.mxu0 0
  %1320 = vmatpush1.bf16.msra.mxu0 %v957
  %1321 = vmatprep.subr.bf16.mxu0 0
  %1322 = vmatpush1.bf16.msra.mxu0 %v958
  %1323 = vmatprep.subr.bf16.mxu0 0
  %1324 = vmatpush1.bf16.msra.mxu0 %v959
  %1325 = vmatprep.subr.bf16.mxu0 0
  %1326 = vmatpush1.bf16.msra.mxu0 %v960
  %1327 = vmatprep.subr.bf16.mxu0 0
  %1328 = vmatpush1.bf16.msra.mxu0 0
  %1329 = vmatprep.subr.bf16.mxu0 0
  %1330 = vmatpush1.bf16.msra.mxu0 0
  %1331 = vmatprep.subr.bf16.mxu0 0
  %1332 = vmatpush1.bf16.msra.mxu0 0
  %1333 = vmatprep.subr.bf16.mxu0 0
  %1334 = vmatpush1.bf16.msra.mxu0 0
  %1335 = vmatprep.subr.bf16.mxu0 0
  %1336 = vmatpush1.bf16.msra.mxu0 0
  %1337 = vmatprep.subr.bf16.mxu0 0
  %1338 = vmatpush1.bf16.msra.mxu0 0
  %1339 = vmatprep.subr.bf16.mxu0 0
  %1340 = vmatpush1.bf16.msra.mxu0 0
  %1341 = vmatprep.subr.bf16.mxu0 0
  %1342 = vmatpush1.bf16.msra.mxu0 0
  %1343 = vmatprep.mubr.bf16.mxu0 0
  %1344 = vmatmul.mubr.bf16.gmra.mrb[0].mxu0 %v1310
  %v1345 = vpop.f32.mrb[0].mxu0
  %v1346 = vadd.f32 0.0, %v1345
  %v1347 = vpop.f32.mrb[0].mxu0
  %v1348 = vpop.f32.mrb[0].mxu0
  %v1349 = vpop.f32.mrb[0].mxu0
  %1350 = vdwg.mxu0
  %v1351 = vadd.f32 %v1309, %v1346
  %v1352 = vtanh.pop %v1351
  %v1353 = vsub.f32 %v1352, %v1303
  %1355 = vset.pattern.permute.xlu0 0
  %1356 = vperm.xlu0 %1355, %v1307
  %v1357 = vpop.permute.xlu0 %1356
  %v1359 = vmul.f32 %v1357, %v1353
  %v1360 = vadd.f32 %v1303, %v1359
  %v1361 = vmul.f32 %v1357, %v1360
  %v1362 = vadd.f32 %v1305, %v1361
  %s1363 = scalar_lea.vmem %s1, 56
  %v1364 = vld [vmem:[%s1363] sm:$0xff]
  %s1365 = scalar_lea.vmem [#allocation4], 56
  %v1366 = vld [vmem:[%s1365] sm:$0xff]
  %v1367 = vpack.c.bf16 %v1360, %v1360
  %1368 = vmatprep.subr.bf16.mxu0 0
  %1369 = vmatpush1.bf16.msra.mxu0 %v953
  %1370 = vmatprep.subr.bf16.mxu0 0
  %1371 = vmatpush1.bf16.msra.mxu0 %v954
  %1372 = vmatprep.subr.bf16.mxu0 0
  %1373 = vmatpush1.bf16.msra.mxu0 %v955
  %1374 = vmatprep.subr.bf16.mxu0 0
  %1375 = vmatpush1.bf16.msra.mxu0 %v956
  %1376 = vmatprep.subr.bf16.mxu0 0
  %1377 = vmatpush1.bf16.msra.mxu0 %v957
  %1378 = vmatprep.subr.bf16.mxu0 0
  %1379 = vmatpush1.bf16.msra.mxu0 %v958
  %1380 = vmatprep.subr.bf16.mxu0 0
  %1381 = vmatpush1.bf16.msra.mxu0 %v959
  %1382 = vmatprep.subr.bf16.mxu0 0
  %1383 = vmatpush1.bf16.msra.mxu0 %v960
  %1384 = vmatprep.subr.bf16.mxu0 0
  %1385 = vmatpush1.bf16.msra.mxu0 0
  %1386 = vmatprep.subr.bf16.mxu0 0
  %1387 = vmatpush1.bf16.msra.mxu0 0
  %1388 = vmatprep.subr.bf16.mxu0 0
  %1389 = vmatpush1.bf16.msra.mxu0 0
  %1390 = vmatprep.subr.bf16.mxu0 0
  %1391 = vmatpush1.bf16.msra.mxu0 0
  %1392 = vmatprep.subr.bf16.mxu0 0
  %1393 = vmatpush1.bf16.msra.mxu0 0
  %1394 = vmatprep.subr.bf16.mxu0 0
  %1395 = vmatpush1.bf16.msra.mxu0 0
  %1396 = vmatprep.subr.bf16.mxu0 0
  %1397 = vmatpush1.bf16.msra.mxu0 0
  %1398 = vmatprep.subr.bf16.mxu0 0
  %1399 = vmatpush1.bf16.msra.mxu0 0
  %1400 = vmatprep.mubr.bf16.mxu0 0
  %1401 = vmatmul.mubr.bf16.gmra.mrb[0].mxu0 %v1367
  %v1402 = vpop.f32.mrb[0].mxu0
  %v1403 = vadd.f32 0.0, %v1402
  %v1404 = vpop.f32.mrb[0].mxu0
  %v1405 = vpop.f32.mrb[0].mxu0
  %v1406 = vpop.f32.mrb[0].mxu0
  %1407 = vdwg.mxu0
  %v1408 = vadd.f32 %v1366, %v1403
  %v1409 = vtanh.pop %v1408
  %v1410 = vsub.f32 %v1409, %v1360
  %1412 = vset.pattern.permute.xlu0 0
  %1413 = vperm.xlu0 %1412, %v1364
  %v1414 = vpop.permute.xlu0 %1413
  %v1416 = vmul.f32 %v1414, %v1410
  %v1417 = vadd.f32 %v1360, %v1416
  %v1418 = vmul.f32 %v1414, %v1417
  %v1419 = vadd.f32 %v1362, %v1418
  %1420 = vst [vmem:[#allocation2] sm:$0xff] %v1417
  %v1421 = vld [vmem:[#allocation3] sm:$0xff]
  %v1422 = vadd.f32 %v1421, %v1419
  %v1423 = vadd.f32 %v1422, %v898
  %1424 = vst [vmem:[#allocation3] sm:$0xff] %v1423
  // Predicated region
  $region42: #{custom_rnn_forward.1} parent=0 // pred_check
    %p1425 = pneg %p33
  $region43: #{custom_rnn_forward.1} parent=0 // pred_check_branch
    %1427 = sbr.rel (%p1425) target = $region45
  $region44: #{custom_rnn_forward.1} parent=0 // pred_region
    %v1428 = vld [vmem:[#allocation3] sm:$0xff]
    %v1429 = vld [vmem:[%s8] sm:$0xff]
    %1431 = vset.pattern.permute.xlu0 0
    %1432 = vperm.xlu0 %1431, %v1429
    %v1433 = vpop.permute.xlu0 %1432
    %v1435 = vmul.f32 %v1428, %v1433
    %v1436 = vpack.c.bf16 %v1435, %v1435
    %v1437 = vld [vmem:[%s6] sm:$0xf]
    %v1438 = vld [vmem:[%s6 + $0x4] sm:$0xf]
    %v1439 = vld [vmem:[%s6 + $0x8] sm:$0xf]
    %v1440 = vld [vmem:[%s6 + $0xc] sm:$0xf]
    %v1441 = vld [vmem:[%s6 + $0x10] sm:$0xf]
    %v1442 = vld [vmem:[%s6 + $0x14] sm:$0xf]
    %v1443 = vld [vmem:[%s6 + $0x18] sm:$0xf]
    %v1444 = vld [vmem:[%s6 + $0x1c] sm:$0xf]
    %v1445 = vld [vmem:[%s6 + $0x20] sm:$0xf]
    %v1446 = vld [vmem:[%s6 + $0x24] sm:$0xf]
    %v1447 = vld [vmem:[%s6 + $0x28] sm:$0xf]
    %v1448 = vld [vmem:[%s6 + $0x2c] sm:$0xf]
    %v1449 = vld [vmem:[%s6 + $0x30] sm:$0xf]
    %v1450 = vld [vmem:[%s6 + $0x34] sm:$0xf]
    %v1451 = vld [vmem:[%s6 + $0x38] sm:$0xf]
    %v1452 = vld [vmem:[%s6 + $0x3c] sm:$0xf]
    %v1453 = vld [vmem:[%s7] sm:$0x1]
    %v1455 = vlaneseq
    %v1456 = vshrl.u32 %v1455, 7
    %v1457 = vsub.s32 0, %v1456
    %v1458 = vrot.slane %v1453, %v1457
    %v1476 = vunpack.c.l.b16 %v1437
    %v1477 = vunpack.c.l.b16 %v1438
    %v1478 = vunpack.c.l.b16 %v1439
    %v1479 = vunpack.c.l.b16 %v1440
    %v1480 = vunpack.c.l.b16 %v1441
    %v1481 = vunpack.c.l.b16 %v1442
    %v1482 = vunpack.c.l.b16 %v1443
    %v1483 = vunpack.c.l.b16 %v1444
    %v1484 = vunpack.c.l.b16 %v1445
    %v1485 = vunpack.c.l.b16 %v1446
    %v1486 = vunpack.c.l.b16 %v1447
    %v1487 = vunpack.c.l.b16 %v1448
    %v1488 = vunpack.c.l.b16 %v1449
    %v1489 = vunpack.c.l.b16 %v1450
    %v1490 = vunpack.c.l.b16 %v1451
    %v1491 = vunpack.c.l.b16 %v1452
    %v1492 = vpack.c.b16 %v1477, %v1476
    %v1493 = vpack.c.b16 %v1479, %v1478
    %v1494 = vpack.c.b16 %v1481, %v1480
    %v1495 = vpack.c.b16 %v1483, %v1482
    %v1496 = vpack.c.b16 %v1485, %v1484
    %v1497 = vpack.c.b16 %v1487, %v1486
    %v1498 = vpack.c.b16 %v1489, %v1488
    %v1499 = vpack.c.b16 %v1491, %v1490
    %1508 = vmatprep.subr.bf16.mxu0 0
    %1509 = vmatpush1.bf16.msra.mxu0 %v1492
    %1510 = vmatprep.subr.bf16.mxu0 0
    %1511 = vmatpush1.bf16.msra.mxu0 %v1493
    %1512 = vmatprep.subr.bf16.mxu0 0
    %1513 = vmatpush1.bf16.msra.mxu0 %v1494
    %1514 = vmatprep.subr.bf16.mxu0 0
    %1515 = vmatpush1.bf16.msra.mxu0 %v1495
    %1516 = vmatprep.subr.bf16.mxu0 0
    %1517 = vmatpush1.bf16.msra.mxu0 %v1496
    %1518 = vmatprep.subr.bf16.mxu0 0
    %1519 = vmatpush1.bf16.msra.mxu0 %v1497
    %1520 = vmatprep.subr.bf16.mxu0 0
    %1521 = vmatpush1.bf16.msra.mxu0 %v1498
    %1522 = vmatprep.subr.bf16.mxu0 0
    %1523 = vmatpush1.bf16.msra.mxu0 %v1499
    %1524 = vmatprep.subr.bf16.mxu0 0
    %1525 = vmatpush1.bf16.msra.mxu0 0
    %1526 = vmatprep.subr.bf16.mxu0 0
    %1527 = vmatpush1.bf16.msra.mxu0 0
    %1528 = vmatprep.subr.bf16.mxu0 0
    %1529 = vmatpush1.bf16.msra.mxu0 0
    %1530 = vmatprep.subr.bf16.mxu0 0
    %1531 = vmatpush1.bf16.msra.mxu0 0
    %1532 = vmatprep.subr.bf16.mxu0 0
    %1533 = vmatpush1.bf16.msra.mxu0 0
    %1534 = vmatprep.subr.bf16.mxu0 0
    %1535 = vmatpush1.bf16.msra.mxu0 0
    %1536 = vmatprep.subr.bf16.mxu0 0
    %1537 = vmatpush1.bf16.msra.mxu0 0
    %1538 = vmatprep.subr.bf16.mxu0 0
    %1539 = vmatpush1.bf16.msra.mxu0 0
    %1540 = vmatprep.mubr.bf16.mxu0 0
    %1541 = vmatmul.mubr.bf16.gmra.mrb[0].mxu0 %v1436
    %v1542 = vpop.f32.mrb[0].mxu0
    %v1543 = vadd.f32 %v1458, %v1542
    %v1544 = vpop.f32.mrb[0].mxu0
    %v1545 = vpop.f32.mrb[0].mxu0
    %v1546 = vpop.f32.mrb[0].mxu0
    %1547 = vdwg.mxu0
    %1548 = vst [vmem:[%s9] sm:$0xff] %v1543
  $region45: #{custom_rnn_forward.1} parent=0 // pred_fallthru
    _
  // Predicated region
  $region46: #{custom_rnn_forward.1} parent=0 // pred_check
    _
  $region47: #{custom_rnn_forward.1} parent=0 // pred_check_branch
    %1550 = sbr.rel (0) target = $region49
  $region48: #{custom_rnn_forward.1} parent=0 // pred_region
    _
  $region49: #{custom_rnn_forward.1} parent=0 // pred_fallthru
    _
  // Predicated region
  $region50: #{custom_rnn_forward.1} parent=0 // pred_check
    _
  $region51: #{custom_rnn_forward.1} parent=0 // pred_check_branch
    %1552 = sbr.rel (0) target = $region53
  $region52: #{custom_rnn_forward.1} parent=0 // pred_region
    _
  $region53: #{custom_rnn_forward.1} parent=0 // pred_fallthru
    _

</llo_original>
